<compile_context>
chip_gen: v7x
topology: tpu7x:2x2x1
jax: 0.10.0
libtpu: 0.0.40
codegen_flags: <defaults>
</compile_context>

<pallas_src>
import functools
import math

import jax
import jax.numpy as jnp
from jax import lax
from jax.experimental import pallas as pl
from jax.experimental.pallas import tpu as pltpu


def _self_attention_kernel(x_ref, wqkv_ref, bqkv_ref, wp_ref, bp_ref,
                           o_ref, qkv_scr, ctx_scr, *, n_head, head_d, b_blk):
    # x_ref block: (b_blk, T, D)
    _, T, D = x_ref.shape
    rows = b_blk * T

    # Flatten batch-block rows for the projections (merge of leading dims only;
    # the lane dim D is untouched).  bf16 operands -> bf16-native MXU.
    x2 = x_ref[...].reshape(rows, D).astype(jnp.bfloat16)

    # --- fused q/k/v projection: (rows, D) @ (D, 3D) on the MXU ---
    # (the 1/sqrt(head_d) scale is already folded into the q columns host-side)
    qkv = jnp.dot(x2, wqkv_ref[...], preferred_element_type=jnp.float32)
    qkv = qkv + bqkv_ref[...]                                 # (rows, 3D) f32

    # Park qkv in VMEM (bf16) so only per-head slices are live in registers
    # inside the attention loop.
    qkv_scr[...] = qkv.astype(jnp.bfloat16)

    # --- per-batch, per-head scaled dot-product attention ---
    # Static Python loops -> static, zero-cost ref slices; all matmuls are 2-D.
    # Per-head results are concatenated and stored lane-dense once per batch.
    for b in range(b_blk):
        r0 = b * T
        ctx_heads = []
        for h in range(n_head):
            c = h * head_d
            qh = qkv_scr[r0:r0 + T, c:c + head_d]                   # (T, hd), pre-scaled, bf16
            kh = qkv_scr[r0:r0 + T, D + c:D + c + head_d]           # (T, hd), bf16
            vh = qkv_scr[r0:r0 + T, 2 * D + c:2 * D + c + head_d]   # (T, hd), bf16

            # q @ k^T with the transpose absorbed into the MXU feed.
            s = lax.dot_general(qh, kh,
                                dimension_numbers=(((1,), (1,)), ((), ())),
                                preferred_element_type=jnp.float32)  # (T, T)

            # numerically-stable softmax with deferred normalization
            m = jnp.max(s, axis=-1, keepdims=True)
            p = jnp.exp(s - m)
            denom = jnp.sum(p, axis=-1, keepdims=True)

            ctx_h = jnp.dot(p.astype(jnp.bfloat16), vh,
                            preferred_element_type=jnp.float32)     # (T, hd)
            ctx_h = ctx_h * pl.reciprocal(denom, approx=True)       # EUP, O(T*hd)
            ctx_heads.append(ctx_h.astype(jnp.bfloat16))

        # One lane-dense (T, D) store per batch element (no masked column vst).
        ctx_scr[r0:r0 + T, :] = jnp.concatenate(ctx_heads, axis=-1)

    # --- output projection on the whole row block ---
    y = jnp.dot(ctx_scr[...], wp_ref[...], preferred_element_type=jnp.float32)
    y = y + bp_ref[...]                                              # (rows, D)

    o_ref[...] = y.reshape(b_blk, T, D).astype(o_ref.dtype)


def _num_tensorcores():
    """Best-effort TensorCore-per-device count (2 on v4/v5p megacore and v7x)."""
    try:
        kind = jax.devices()[0].device_kind.lower()
    except Exception:  # pragma: no cover - defensive
        return 1
    for tag in ("v7", "v5p", "v4"):
        if tag in kind:
            return 2
    return 1


def _pick_b_block(B, T, num_tc, target_rows=1024):
    """Largest divisor of B with B_blk*T <= target_rows.  Only require >= num_tc
    grid slices when there are multiple TensorCores to feed (v7x / megacore);
    on single-TC v5e/v6e fold as much batch as fits into one step."""
    best = 1
    limit = max(target_rows, T)
    for d in range(1, B + 1):
        if B % d:
            continue
        if d * T > limit:
            continue
        if num_tc > 1 and B >= num_tc and (B // d) < num_tc:
            continue
        best = max(best, d)
    return best


def _derive_vmem_limit(b_blk, T, D, x_bytes):
    """VMEM budget derived from actual block/scratch sizes (+ headroom),
    clamped so it is safe on v7x's 64 MiB as well as v5e/v6e's 128 MiB."""
    rows = b_blk * T
    x_blk = b_blk * T * D * x_bytes          # double-buffered input block
    o_blk = b_blk * T * D * x_bytes          # double-buffered output block
    w_qkv = D * 3 * D * 2                    # bf16 fused weight
    b_qkv = 3 * D * 4
    w_p = D * D * 2                          # bf16
    b_p = D * 4
    scratch = rows * 3 * D * 2 + rows * D * 2   # bf16 qkv + ctx scratch
    need = 2 * (x_blk + o_blk) + 2 * (w_qkv + b_qkv + w_p + b_p) + scratch
    need = int(need * 1.5) + (4 << 20)       # headroom for f32 temporaries etc.
    return max(16 << 20, min(need, 48 << 20))


def self_attention(x, wq, wk, wv, wp, bq, bk, bv, bp, *, n_head):
    """x: (B, T, D). Weights: (D, D) stored as (in, out). Biases: (D,) or (1, D)."""
    B, T, D = x.shape
    assert D % n_head == 0, "d must be divisible by n_head"
    head_d = D // n_head

    # Normalize bias shapes to (1, D); keep biases f32 (tiny, added in f32).
    bq = jnp.reshape(bq, (1, D)).astype(jnp.float32)
    bk = jnp.reshape(bk, (1, D)).astype(jnp.float32)
    bv = jnp.reshape(bv, (1, D)).astype(jnp.float32)
    bp = jnp.reshape(bp, (1, D)).astype(jnp.float32)

    # Fuse q/k/v into one (D, 3D) weight, fold the attention scale into the
    # q columns, and store the MXU operands in bf16.
    scale = 1.0 / math.sqrt(head_d)
    w_qkv = jnp.concatenate([wq * scale, wk, wv], axis=1).astype(jnp.bfloat16)
    b_qkv = jnp.concatenate([bq * scale, bk, bv], axis=1)     # (1, 3D) f32
    wp_bf = wp.astype(jnp.bfloat16)

    num_tc = _num_tensorcores()
    b_blk = _pick_b_block(B, T, num_tc)
    grid = (B // b_blk,)
    rows = b_blk * T

    kernel = functools.partial(_self_attention_kernel,
                               n_head=n_head, head_d=head_d, b_blk=b_blk)

    # Weight/bias blocks have constant index_maps -> fetched once, re-used
    # across grid steps.  (Single-buffering them via pipeline_mode would halve
    # their VMEM further at large D; bf16 storage already halves the bytes.)
    in_specs = [
        pl.BlockSpec((b_blk, T, D), lambda i: (i, 0, 0)),     # x
        pl.BlockSpec((D, 3 * D), lambda i: (0, 0)),           # fused Wqkv (bf16)
        pl.BlockSpec((1, 3 * D), lambda i: (0, 0)),           # fused bqkv (f32)
        pl.BlockSpec((D, D), lambda i: (0, 0)),               # Wp (bf16)
        pl.BlockSpec((1, D), lambda i: (0, 0)),               # bp (f32)
    ]
    out_spec = pl.BlockSpec((b_blk, T, D), lambda i: (i, 0, 0))

    # Advisory cost estimate for the XLA scheduler.
    flops = int(2 * B * T * D * 3 * D                 # fused qkv projection
                + 4 * B * n_head * T * T * head_d     # scores + p@v
                + 2 * B * T * D * D)                  # output projection
    transcendentals = int(B * n_head * T * T)         # exp
    bytes_accessed = int(4 * 2 * B * T * D            # x in + y out (f32)
                         + 2 * 4 * D * D              # bf16 weights
                         + 4 * 4 * D)                 # biases

    x_bytes = jnp.dtype(x.dtype).itemsize

    return pl.pallas_call(
        kernel,
        out_shape=jax.ShapeDtypeStruct((B, T, D), x.dtype),
        grid_spec=pltpu.PrefetchScalarGridSpec(
            num_scalar_prefetch=0,
            grid=grid,
            in_specs=in_specs,
            out_specs=out_spec,
            scratch_shapes=[
                pltpu.VMEM((rows, 3 * D), jnp.bfloat16),      # qkv
                pltpu.VMEM((rows, D), jnp.bfloat16),          # context
            ],
        ),
        compiler_params=pltpu.CompilerParams(
            dimension_semantics=("parallel",),
            vmem_limit_bytes=_derive_vmem_limit(b_blk, T, D, x_bytes),
        ),
        cost_estimate=pl.CostEstimate(flops=flops,
                                      transcendentals=transcendentals,
                                      bytes_accessed=bytes_accessed),
    )(x, w_qkv, b_qkv, wp_bf, bp)


def _reference(x, wq, wk, wv, wp, bq, bk, bv, bp, n_head):
    B, T, D = x.shape
    hd = D // n_head
    q = x @ wq + bq
    k = x @ wk + bk
    v = x @ wv + bv
    qh = q.reshape(B, T, n_head, hd)
    kh = k.reshape(B, T, n_head, hd)
    vh = v.reshape(B, T, n_head, hd)
    s = jnp.einsum('bqhd,bkhd->bhqk', qh, kh) / math.sqrt(hd)
    a = jax.nn.softmax(s, axis=-1)
    ctx = jnp.einsum('bhqk,bkhd->bqhd', a, vh).reshape(B, T, D)
    return ctx @ wp + bp


if __name__ == "__main__":
    # config: d=32, n_head=4, sequence_length=8, bias=True, dropout=0.0
    B, T, D, H = 2, 8, 32, 4

    key = jax.random.PRNGKey(0)
    ks = jax.random.split(key, 9)
    scale = 1.0 / math.sqrt(D)

    x  = jax.random.normal(ks[0], (B, T, D), dtype=jnp.float32)
    wq = jax.random.uniform(ks[1], (D, D), jnp.float32, -scale, scale)
    wk = jax.random.uniform(ks[2], (D, D), jnp.float32, -scale, scale)
    wv = jax.random.uniform(ks[3], (D, D), jnp.float32, -scale, scale)
    wp = jax.random.uniform(ks[4], (D, D), jnp.float32, -scale, scale)
    bq = jax.random.uniform(ks[5], (1, D), jnp.float32, -scale, scale)
    bk = jax.random.uniform(ks[6], (1, D), jnp.float32, -scale, scale)
    bv = jax.random.uniform(ks[7], (1, D), jnp.float32, -scale, scale)
    bp = jax.random.uniform(ks[8], (1, D), jnp.float32, -scale, scale)

    out = self_attention(x, wq, wk, wv, wp, bq, bk, bv, bp, n_head=H)
    out = jax.block_until_ready(out)

    ref = _reference(x, wq, wk, wv, wp, bq, bk, bv, bp, H)
    assert out.shape == (B, T, D)
    # bf16 MXU operands + approx reciprocal -> loosened tolerance vs f32 ref.
    assert jnp.allclose(out, ref, atol=2e-2, rtol=5e-2), "mismatch vs reference"

    print("KERNEL_OK")
</pallas_src>

<mosaic_0001>
module attributes {stable_mosaic.version = 11 : i64} {
  func.func @_self_attention_kernel(%arg0: i32, %arg1: memref<2x8x32xf32, #tpu.memory_space<vmem>>, %arg2: memref<32x96xbf16, #tpu.memory_space<vmem>>, %arg3: memref<1x96xf32, #tpu.memory_space<vmem>>, %arg4: memref<32x32xbf16, #tpu.memory_space<vmem>>, %arg5: memref<1x32xf32, #tpu.memory_space<vmem>>, %arg6: memref<2x8x32xf32, #tpu.memory_space<vmem>>, %arg7: memref<16x96xbf16, #tpu.memory_space<vmem>>, %arg8: memref<16x32xbf16, #tpu.memory_space<vmem>>) attributes {dimension_semantics = [#tpu.dimension_semantics<parallel>], iteration_bounds = array<i64: 1>, scalar_prefetch = 0 : i64, scratch_operands = 2 : i64, tpu.core_type = #tpu.core_type<tc>, window_params = [{transform_indices = @transform_0, window_bounds = array<i64: 2, 8, 32>}, {pipeline_mode = #tpu.pipeline_mode<synchronous>, transform_indices = @transform_1, window_bounds = array<i64: 32, 96>}, {pipeline_mode = #tpu.pipeline_mode<synchronous>, transform_indices = @transform_2, window_bounds = array<i64: 1, 96>}, {pipeline_mode = #tpu.pipeline_mode<synchronous>, transform_indices = @transform_3, window_bounds = array<i64: 32, 32>}, {pipeline_mode = #tpu.pipeline_mode<synchronous>, transform_indices = @transform_4, window_bounds = array<i64: 1, 32>}, {transform_indices = @transform_5, window_bounds = array<i64: 2, 8, 32>}]} {
    %c0 = arith.constant 0 : index
    %c0_0 = arith.constant 0 : index
    %c0_1 = arith.constant 0 : index
    %0 = vector.load %arg1[%c0, %c0_0, %c0_1] : memref<2x8x32xf32, #tpu.memory_space<vmem>>, vector<2x8x32xf32>
    %1 = vector.shape_cast %0 : vector<2x8x32xf32> to vector<16x32xf32>
    %2 = arith.truncf %1 : vector<16x32xf32> to vector<16x32xbf16>
    %c0_2 = arith.constant 0 : index
    %c0_3 = arith.constant 0 : index
    %3 = vector.load %arg2[%c0_2, %c0_3] : memref<32x96xbf16, #tpu.memory_space<vmem>>, vector<32x96xbf16>
    %cst = arith.constant dense<0.000000e+00> : vector<16x96xf32>
    %4 = tpu.matmul %2, %3, %cst {dimension_numbers = #tpu.dot_dimension_numbers<[1], [0], [0], [1], [0, 0, 1, 1], [], []>} : vector<16x32xbf16>, vector<32x96xbf16>, vector<16x96xf32> -> vector<16x96xf32>
    %c0_4 = arith.constant 0 : index
    %c0_5 = arith.constant 0 : index
    %5 = vector.load %arg3[%c0_4, %c0_5] : memref<1x96xf32, #tpu.memory_space<vmem>>, vector<1x96xf32>
    %6 = vector.broadcast %5 : vector<1x96xf32> to vector<16x96xf32>
    %7 = arith.addf %4, %6 : vector<16x96xf32>
    %8 = arith.truncf %7 : vector<16x96xf32> to vector<16x96xbf16>
    %c0_6 = arith.constant 0 : index
    %c0_7 = arith.constant 0 : index
    %9 = vector.load %arg7[%c0_6, %c0_7] : memref<16x96xbf16, #tpu.memory_space<vmem>>, vector<16x96xbf16>
    tpu.vector_store %arg7[%c0_6, %c0_7], %8 {strides = array<i32>} : memref<16x96xbf16, #tpu.memory_space<vmem>>, vector<16x96xbf16>,
    %c0_8 = arith.constant 0 : index
    %c0_9 = arith.constant 0 : index
    %10 = vector.load %arg7[%c0_8, %c0_9] : memref<16x96xbf16, #tpu.memory_space<vmem>>, vector<8x8xbf16>
    %c0_10 = arith.constant 0 : index
    %c32 = arith.constant 32 : index
    %11 = vector.load %arg7[%c0_10, %c32] : memref<16x96xbf16, #tpu.memory_space<vmem>>, vector<8x8xbf16>
    %c0_11 = arith.constant 0 : index
    %c64 = arith.constant 64 : index
    %12 = vector.load %arg7[%c0_11, %c64] : memref<16x96xbf16, #tpu.memory_space<vmem>>, vector<8x8xbf16>
    %cst_12 = arith.constant dense<0.000000e+00> : vector<8x8xf32>
    %13 = tpu.matmul %10, %11, %cst_12 {dimension_numbers = #tpu.dot_dimension_numbers<[1], [1], [0], [0], [0, 0, 1, 0], [], []>} : vector<8x8xbf16>, vector<8x8xbf16>, vector<8x8xf32> -> vector<8x8xf32>
    %cst_13 = arith.constant dense<0xFF800000> : vector<8xf32>
    %14 = vector.multi_reduction <maximumf>, %13, %cst_13 [1] : vector<8x8xf32> to vector<8xf32>
    %15 = vector.shape_cast %14 : vector<8xf32> to vector<8x1xf32>
    %16 = vector.broadcast %15 : vector<8x1xf32> to vector<8x8xf32>
    %17 = arith.subf %13, %16 : vector<8x8xf32>
    %18 = math.exp %17 : vector<8x8xf32>
    %cst_14 = arith.constant dense<0.000000e+00> : vector<8xf32>
    %19 = vector.multi_reduction <add>, %18, %cst_14 [1] : vector<8x8xf32> to vector<8xf32>
    %20 = vector.shape_cast %19 : vector<8xf32> to vector<8x1xf32>
    %21 = arith.truncf %18 : vector<8x8xf32> to vector<8x8xbf16>
    %cst_15 = arith.constant dense<0.000000e+00> : vector<8x8xf32>
    %22 = tpu.matmul %21, %12, %cst_15 {dimension_numbers = #tpu.dot_dimension_numbers<[1], [0], [0], [1], [0, 0, 1, 1], [], []>} : vector<8x8xbf16>, vector<8x8xbf16>, vector<8x8xf32> -> vector<8x8xf32>
    %23 = tpu.reciprocal %20 {approx = true} : vector<8x1xf32> -> vector<8x1xf32>
    %24 = vector.broadcast %23 : vector<8x1xf32> to vector<8x8xf32>
    %25 = arith.mulf %22, %24 : vector<8x8xf32>
    %26 = arith.truncf %25 : vector<8x8xf32> to vector<8x8xbf16>
    %c0_16 = arith.constant 0 : index
    %c8 = arith.constant 8 : index
    %27 = vector.load %arg7[%c0_16, %c8] : memref<16x96xbf16, #tpu.memory_space<vmem>>, vector<8x8xbf16>
    %c0_17 = arith.constant 0 : index
    %c40 = arith.constant 40 : index
    %28 = vector.load %arg7[%c0_17, %c40] : memref<16x96xbf16, #tpu.memory_space<vmem>>, vector<8x8xbf16>
    %c0_18 = arith.constant 0 : index
    %c72 = arith.constant 72 : index
    %29 = vector.load %arg7[%c0_18, %c72] : memref<16x96xbf16, #tpu.memory_space<vmem>>, vector<8x8xbf16>
    %cst_19 = arith.constant dense<0.000000e+00> : vector<8x8xf32>
    %30 = tpu.matmul %27, %28, %cst_19 {dimension_numbers = #tpu.dot_dimension_numbers<[1], [1], [0], [0], [0, 0, 1, 0], [], []>} : vector<8x8xbf16>, vector<8x8xbf16>, vector<8x8xf32> -> vector<8x8xf32>
    %cst_20 = arith.constant dense<0xFF800000> : vector<8xf32>
    %31 = vector.multi_reduction <maximumf>, %30, %cst_20 [1] : vector<8x8xf32> to vector<8xf32>
    %32 = vector.shape_cast %31 : vector<8xf32> to vector<8x1xf32>
    %33 = vector.broadcast %32 : vector<8x1xf32> to vector<8x8xf32>
    %34 = arith.subf %30, %33 : vector<8x8xf32>
    %35 = math.exp %34 : vector<8x8xf32>
    %cst_21 = arith.constant dense<0.000000e+00> : vector<8xf32>
    %36 = vector.multi_reduction <add>, %35, %cst_21 [1] : vector<8x8xf32> to vector<8xf32>
    %37 = vector.shape_cast %36 : vector<8xf32> to vector<8x1xf32>
    %38 = arith.truncf %35 : vector<8x8xf32> to vector<8x8xbf16>
    %cst_22 = arith.constant dense<0.000000e+00> : vector<8x8xf32>
    %39 = tpu.matmul %38, %29, %cst_22 {dimension_numbers = #tpu.dot_dimension_numbers<[1], [0], [0], [1], [0, 0, 1, 1], [], []>} : vector<8x8xbf16>, vector<8x8xbf16>, vector<8x8xf32> -> vector<8x8xf32>
    %40 = tpu.reciprocal %37 {approx = true} : vector<8x1xf32> -> vector<8x1xf32>
    %41 = vector.broadcast %40 : vector<8x1xf32> to vector<8x8xf32>
    %42 = arith.mulf %39, %41 : vector<8x8xf32>
    %43 = arith.truncf %42 : vector<8x8xf32> to vector<8x8xbf16>
    %c0_23 = arith.constant 0 : index
    %c16 = arith.constant 16 : index
    %44 = vector.load %arg7[%c0_23, %c16] : memref<16x96xbf16, #tpu.memory_space<vmem>>, vector<8x8xbf16>
    %c0_24 = arith.constant 0 : index
    %c48 = arith.constant 48 : index
    %45 = vector.load %arg7[%c0_24, %c48] : memref<16x96xbf16, #tpu.memory_space<vmem>>, vector<8x8xbf16>
    %c0_25 = arith.constant 0 : index
    %c80 = arith.constant 80 : index
    %46 = vector.load %arg7[%c0_25, %c80] : memref<16x96xbf16, #tpu.memory_space<vmem>>, vector<8x8xbf16>
    %cst_26 = arith.constant dense<0.000000e+00> : vector<8x8xf32>
    %47 = tpu.matmul %44, %45, %cst_26 {dimension_numbers = #tpu.dot_dimension_numbers<[1], [1], [0], [0], [0, 0, 1, 0], [], []>} : vector<8x8xbf16>, vector<8x8xbf16>, vector<8x8xf32> -> vector<8x8xf32>
    %cst_27 = arith.constant dense<0xFF800000> : vector<8xf32>
    %48 = vector.multi_reduction <maximumf>, %47, %cst_27 [1] : vector<8x8xf32> to vector<8xf32>
    %49 = vector.shape_cast %48 : vector<8xf32> to vector<8x1xf32>
    %50 = vector.broadcast %49 : vector<8x1xf32> to vector<8x8xf32>
    %51 = arith.subf %47, %50 : vector<8x8xf32>
    %52 = math.exp %51 : vector<8x8xf32>
    %cst_28 = arith.constant dense<0.000000e+00> : vector<8xf32>
    %53 = vector.multi_reduction <add>, %52, %cst_28 [1] : vector<8x8xf32> to vector<8xf32>
    %54 = vector.shape_cast %53 : vector<8xf32> to vector<8x1xf32>
    %55 = arith.truncf %52 : vector<8x8xf32> to vector<8x8xbf16>
    %cst_29 = arith.constant dense<0.000000e+00> : vector<8x8xf32>
    %56 = tpu.matmul %55, %46, %cst_29 {dimension_numbers = #tpu.dot_dimension_numbers<[1], [0], [0], [1], [0, 0, 1, 1], [], []>} : vector<8x8xbf16>, vector<8x8xbf16>, vector<8x8xf32> -> vector<8x8xf32>
    %57 = tpu.reciprocal %54 {approx = true} : vector<8x1xf32> -> vector<8x1xf32>
    %58 = vector.broadcast %57 : vector<8x1xf32> to vector<8x8xf32>
    %59 = arith.mulf %56, %58 : vector<8x8xf32>
    %60 = arith.truncf %59 : vector<8x8xf32> to vector<8x8xbf16>
    %c0_30 = arith.constant 0 : index
    %c24 = arith.constant 24 : index
    %61 = vector.load %arg7[%c0_30, %c24] : memref<16x96xbf16, #tpu.memory_space<vmem>>, vector<8x8xbf16>
    %c0_31 = arith.constant 0 : index
    %c56 = arith.constant 56 : index
    %62 = vector.load %arg7[%c0_31, %c56] : memref<16x96xbf16, #tpu.memory_space<vmem>>, vector<8x8xbf16>
    %c0_32 = arith.constant 0 : index
    %c88 = arith.constant 88 : index
    %63 = vector.load %arg7[%c0_32, %c88] : memref<16x96xbf16, #tpu.memory_space<vmem>>, vector<8x8xbf16>
    %cst_33 = arith.constant dense<0.000000e+00> : vector<8x8xf32>
    %64 = tpu.matmul %61, %62, %cst_33 {dimension_numbers = #tpu.dot_dimension_numbers<[1], [1], [0], [0], [0, 0, 1, 0], [], []>} : vector<8x8xbf16>, vector<8x8xbf16>, vector<8x8xf32> -> vector<8x8xf32>
    %cst_34 = arith.constant dense<0xFF800000> : vector<8xf32>
    %65 = vector.multi_reduction <maximumf>, %64, %cst_34 [1] : vector<8x8xf32> to vector<8xf32>
    %66 = vector.shape_cast %65 : vector<8xf32> to vector<8x1xf32>
    %67 = vector.broadcast %66 : vector<8x1xf32> to vector<8x8xf32>
    %68 = arith.subf %64, %67 : vector<8x8xf32>
    %69 = math.exp %68 : vector<8x8xf32>
    %cst_35 = arith.constant dense<0.000000e+00> : vector<8xf32>
    %70 = vector.multi_reduction <add>, %69, %cst_35 [1] : vector<8x8xf32> to vector<8xf32>
    %71 = vector.shape_cast %70 : vector<8xf32> to vector<8x1xf32>
    %72 = arith.truncf %69 : vector<8x8xf32> to vector<8x8xbf16>
    %cst_36 = arith.constant dense<0.000000e+00> : vector<8x8xf32>
    %73 = tpu.matmul %72, %63, %cst_36 {dimension_numbers = #tpu.dot_dimension_numbers<[1], [0], [0], [1], [0, 0, 1, 1], [], []>} : vector<8x8xbf16>, vector<8x8xbf16>, vector<8x8xf32> -> vector<8x8xf32>
    %74 = tpu.reciprocal %71 {approx = true} : vector<8x1xf32> -> vector<8x1xf32>
    %75 = vector.broadcast %74 : vector<8x1xf32> to vector<8x8xf32>
    %76 = arith.mulf %73, %75 : vector<8x8xf32>
    %77 = arith.truncf %76 : vector<8x8xf32> to vector<8x8xbf16>
    %78 = tpu.concatenate %26, %43, %60, %77 in 1 : vector<8x8xbf16>, vector<8x8xbf16>, vector<8x8xbf16>, vector<8x8xbf16> -> vector<8x32xbf16>
    %c0_37 = arith.constant 0 : index
    %c0_38 = arith.constant 0 : index
    %79 = vector.load %arg8[%c0_37, %c0_38] : memref<16x32xbf16, #tpu.memory_space<vmem>>, vector<8x32xbf16>
    tpu.vector_store %arg8[%c0_37, %c0_38], %78 {strides = array<i32>} : memref<16x32xbf16, #tpu.memory_space<vmem>>, vector<8x32xbf16>,
    %c8_39 = arith.constant 8 : index
    %c0_40 = arith.constant 0 : index
    %80 = vector.load %arg7[%c8_39, %c0_40] : memref<16x96xbf16, #tpu.memory_space<vmem>>, vector<8x8xbf16>
    %c8_41 = arith.constant 8 : index
    %c32_42 = arith.constant 32 : index
    %81 = vector.load %arg7[%c8_41, %c32_42] : memref<16x96xbf16, #tpu.memory_space<vmem>>, vector<8x8xbf16>
    %c8_43 = arith.constant 8 : index
    %c64_44 = arith.constant 64 : index
    %82 = vector.load %arg7[%c8_43, %c64_44] : memref<16x96xbf16, #tpu.memory_space<vmem>>, vector<8x8xbf16>
    %cst_45 = arith.constant dense<0.000000e+00> : vector<8x8xf32>
    %83 = tpu.matmul %80, %81, %cst_45 {dimension_numbers = #tpu.dot_dimension_numbers<[1], [1], [0], [0], [0, 0, 1, 0], [], []>} : vector<8x8xbf16>, vector<8x8xbf16>, vector<8x8xf32> -> vector<8x8xf32>
    %cst_46 = arith.constant dense<0xFF800000> : vector<8xf32>
    %84 = vector.multi_reduction <maximumf>, %83, %cst_46 [1] : vector<8x8xf32> to vector<8xf32>
    %85 = vector.shape_cast %84 : vector<8xf32> to vector<8x1xf32>
    %86 = vector.broadcast %85 : vector<8x1xf32> to vector<8x8xf32>
    %87 = arith.subf %83, %86 : vector<8x8xf32>
    %88 = math.exp %87 : vector<8x8xf32>
    %cst_47 = arith.constant dense<0.000000e+00> : vector<8xf32>
    %89 = vector.multi_reduction <add>, %88, %cst_47 [1] : vector<8x8xf32> to vector<8xf32>
    %90 = vector.shape_cast %89 : vector<8xf32> to vector<8x1xf32>
    %91 = arith.truncf %88 : vector<8x8xf32> to vector<8x8xbf16>
    %cst_48 = arith.constant dense<0.000000e+00> : vector<8x8xf32>
    %92 = tpu.matmul %91, %82, %cst_48 {dimension_numbers = #tpu.dot_dimension_numbers<[1], [0], [0], [1], [0, 0, 1, 1], [], []>} : vector<8x8xbf16>, vector<8x8xbf16>, vector<8x8xf32> -> vector<8x8xf32>
    %93 = tpu.reciprocal %90 {approx = true} : vector<8x1xf32> -> vector<8x1xf32>
    %94 = vector.broadcast %93 : vector<8x1xf32> to vector<8x8xf32>
    %95 = arith.mulf %92, %94 : vector<8x8xf32>
    %96 = arith.truncf %95 : vector<8x8xf32> to vector<8x8xbf16>
    %c8_49 = arith.constant 8 : index
    %c8_50 = arith.constant 8 : index
    %97 = vector.load %arg7[%c8_49, %c8_50] : memref<16x96xbf16, #tpu.memory_space<vmem>>, vector<8x8xbf16>
    %c8_51 = arith.constant 8 : index
    %c40_52 = arith.constant 40 : index
    %98 = vector.load %arg7[%c8_51, %c40_52] : memref<16x96xbf16, #tpu.memory_space<vmem>>, vector<8x8xbf16>
    %c8_53 = arith.constant 8 : index
    %c72_54 = arith.constant 72 : index
    %99 = vector.load %arg7[%c8_53, %c72_54] : memref<16x96xbf16, #tpu.memory_space<vmem>>, vector<8x8xbf16>
    %cst_55 = arith.constant dense<0.000000e+00> : vector<8x8xf32>
    %100 = tpu.matmul %97, %98, %cst_55 {dimension_numbers = #tpu.dot_dimension_numbers<[1], [1], [0], [0], [0, 0, 1, 0], [], []>} : vector<8x8xbf16>, vector<8x8xbf16>, vector<8x8xf32> -> vector<8x8xf32>
    %cst_56 = arith.constant dense<0xFF800000> : vector<8xf32>
    %101 = vector.multi_reduction <maximumf>, %100, %cst_56 [1] : vector<8x8xf32> to vector<8xf32>
    %102 = vector.shape_cast %101 : vector<8xf32> to vector<8x1xf32>
    %103 = vector.broadcast %102 : vector<8x1xf32> to vector<8x8xf32>
    %104 = arith.subf %100, %103 : vector<8x8xf32>
    %105 = math.exp %104 : vector<8x8xf32>
    %cst_57 = arith.constant dense<0.000000e+00> : vector<8xf32>
    %106 = vector.multi_reduction <add>, %105, %cst_57 [1] : vector<8x8xf32> to vector<8xf32>
    %107 = vector.shape_cast %106 : vector<8xf32> to vector<8x1xf32>
    %108 = arith.truncf %105 : vector<8x8xf32> to vector<8x8xbf16>
    %cst_58 = arith.constant dense<0.000000e+00> : vector<8x8xf32>
    %109 = tpu.matmul %108, %99, %cst_58 {dimension_numbers = #tpu.dot_dimension_numbers<[1], [0], [0], [1], [0, 0, 1, 1], [], []>} : vector<8x8xbf16>, vector<8x8xbf16>, vector<8x8xf32> -> vector<8x8xf32>
    %110 = tpu.reciprocal %107 {approx = true} : vector<8x1xf32> -> vector<8x1xf32>
    %111 = vector.broadcast %110 : vector<8x1xf32> to vector<8x8xf32>
    %112 = arith.mulf %109, %111 : vector<8x8xf32>
    %113 = arith.truncf %112 : vector<8x8xf32> to vector<8x8xbf16>
    %c8_59 = arith.constant 8 : index
    %c16_60 = arith.constant 16 : index
    %114 = vector.load %arg7[%c8_59, %c16_60] : memref<16x96xbf16, #tpu.memory_space<vmem>>, vector<8x8xbf16>
    %c8_61 = arith.constant 8 : index
    %c48_62 = arith.constant 48 : index
    %115 = vector.load %arg7[%c8_61, %c48_62] : memref<16x96xbf16, #tpu.memory_space<vmem>>, vector<8x8xbf16>
    %c8_63 = arith.constant 8 : index
    %c80_64 = arith.constant 80 : index
    %116 = vector.load %arg7[%c8_63, %c80_64] : memref<16x96xbf16, #tpu.memory_space<vmem>>, vector<8x8xbf16>
    %cst_65 = arith.constant dense<0.000000e+00> : vector<8x8xf32>
    %117 = tpu.matmul %114, %115, %cst_65 {dimension_numbers = #tpu.dot_dimension_numbers<[1], [1], [0], [0], [0, 0, 1, 0], [], []>} : vector<8x8xbf16>, vector<8x8xbf16>, vector<8x8xf32> -> vector<8x8xf32>
    %cst_66 = arith.constant dense<0xFF800000> : vector<8xf32>
    %118 = vector.multi_reduction <maximumf>, %117, %cst_66 [1] : vector<8x8xf32> to vector<8xf32>
    %119 = vector.shape_cast %118 : vector<8xf32> to vector<8x1xf32>
    %120 = vector.broadcast %119 : vector<8x1xf32> to vector<8x8xf32>
    %121 = arith.subf %117, %120 : vector<8x8xf32>
    %122 = math.exp %121 : vector<8x8xf32>
    %cst_67 = arith.constant dense<0.000000e+00> : vector<8xf32>
    %123 = vector.multi_reduction <add>, %122, %cst_67 [1] : vector<8x8xf32> to vector<8xf32>
    %124 = vector.shape_cast %123 : vector<8xf32> to vector<8x1xf32>
    %125 = arith.truncf %122 : vector<8x8xf32> to vector<8x8xbf16>
    %cst_68 = arith.constant dense<0.000000e+00> : vector<8x8xf32>
    %126 = tpu.matmul %125, %116, %cst_68 {dimension_numbers = #tpu.dot_dimension_numbers<[1], [0], [0], [1], [0, 0, 1, 1], [], []>} : vector<8x8xbf16>, vector<8x8xbf16>, vector<8x8xf32> -> vector<8x8xf32>
    %127 = tpu.reciprocal %124 {approx = true} : vector<8x1xf32> -> vector<8x1xf32>
    %128 = vector.broadcast %127 : vector<8x1xf32> to vector<8x8xf32>
    %129 = arith.mulf %126, %128 : vector<8x8xf32>
    %130 = arith.truncf %129 : vector<8x8xf32> to vector<8x8xbf16>
    %c8_69 = arith.constant 8 : index
    %c24_70 = arith.constant 24 : index
    %131 = vector.load %arg7[%c8_69, %c24_70] : memref<16x96xbf16, #tpu.memory_space<vmem>>, vector<8x8xbf16>
    %c8_71 = arith.constant 8 : index
    %c56_72 = arith.constant 56 : index
    %132 = vector.load %arg7[%c8_71, %c56_72] : memref<16x96xbf16, #tpu.memory_space<vmem>>, vector<8x8xbf16>
    %c8_73 = arith.constant 8 : index
    %c88_74 = arith.constant 88 : index
    %133 = vector.load %arg7[%c8_73, %c88_74] : memref<16x96xbf16, #tpu.memory_space<vmem>>, vector<8x8xbf16>
    %cst_75 = arith.constant dense<0.000000e+00> : vector<8x8xf32>
    %134 = tpu.matmul %131, %132, %cst_75 {dimension_numbers = #tpu.dot_dimension_numbers<[1], [1], [0], [0], [0, 0, 1, 0], [], []>} : vector<8x8xbf16>, vector<8x8xbf16>, vector<8x8xf32> -> vector<8x8xf32>
    %cst_76 = arith.constant dense<0xFF800000> : vector<8xf32>
    %135 = vector.multi_reduction <maximumf>, %134, %cst_76 [1] : vector<8x8xf32> to vector<8xf32>
    %136 = vector.shape_cast %135 : vector<8xf32> to vector<8x1xf32>
    %137 = vector.broadcast %136 : vector<8x1xf32> to vector<8x8xf32>
    %138 = arith.subf %134, %137 : vector<8x8xf32>
    %139 = math.exp %138 : vector<8x8xf32>
    %cst_77 = arith.constant dense<0.000000e+00> : vector<8xf32>
    %140 = vector.multi_reduction <add>, %139, %cst_77 [1] : vector<8x8xf32> to vector<8xf32>
    %141 = vector.shape_cast %140 : vector<8xf32> to vector<8x1xf32>
    %142 = arith.truncf %139 : vector<8x8xf32> to vector<8x8xbf16>
    %cst_78 = arith.constant dense<0.000000e+00> : vector<8x8xf32>
    %143 = tpu.matmul %142, %133, %cst_78 {dimension_numbers = #tpu.dot_dimension_numbers<[1], [0], [0], [1], [0, 0, 1, 1], [], []>} : vector<8x8xbf16>, vector<8x8xbf16>, vector<8x8xf32> -> vector<8x8xf32>
    %144 = tpu.reciprocal %141 {approx = true} : vector<8x1xf32> -> vector<8x1xf32>
    %145 = vector.broadcast %144 : vector<8x1xf32> to vector<8x8xf32>
    %146 = arith.mulf %143, %145 : vector<8x8xf32>
    %147 = arith.truncf %146 : vector<8x8xf32> to vector<8x8xbf16>
    %148 = tpu.concatenate %96, %113, %130, %147 in 1 : vector<8x8xbf16>, vector<8x8xbf16>, vector<8x8xbf16>, vector<8x8xbf16> -> vector<8x32xbf16>
    %c8_79 = arith.constant 8 : index
    %c0_80 = arith.constant 0 : index
    %149 = vector.load %arg8[%c8_79, %c0_80] : memref<16x32xbf16, #tpu.memory_space<vmem>>, vector<8x32xbf16>
    tpu.vector_store %arg8[%c8_79, %c0_80], %148 {strides = array<i32>} : memref<16x32xbf16, #tpu.memory_space<vmem>>, vector<8x32xbf16>,
    %c0_81 = arith.constant 0 : index
    %c0_82 = arith.constant 0 : index
    %150 = vector.load %arg8[%c0_81, %c0_82] : memref<16x32xbf16, #tpu.memory_space<vmem>>, vector<16x32xbf16>
    %c0_83 = arith.constant 0 : index
    %c0_84 = arith.constant 0 : index
    %151 = vector.load %arg4[%c0_83, %c0_84] : memref<32x32xbf16, #tpu.memory_space<vmem>>, vector<32x32xbf16>
    %cst_85 = arith.constant dense<0.000000e+00> : vector<16x32xf32>
    %152 = tpu.matmul %150, %151, %cst_85 {dimension_numbers = #tpu.dot_dimension_numbers<[1], [0], [0], [1], [0, 0, 1, 1], [], []>} : vector<16x32xbf16>, vector<32x32xbf16>, vector<16x32xf32> -> vector<16x32xf32>
    %c0_86 = arith.constant 0 : index
    %c0_87 = arith.constant 0 : index
    %153 = vector.load %arg5[%c0_86, %c0_87] : memref<1x32xf32, #tpu.memory_space<vmem>>, vector<1x32xf32>
    %154 = vector.broadcast %153 : vector<1x32xf32> to vector<16x32xf32>
    %155 = arith.addf %152, %154 : vector<16x32xf32>
    %156 = vector.shape_cast %155 : vector<16x32xf32> to vector<2x8x32xf32>
    %c0_88 = arith.constant 0 : index
    %c0_89 = arith.constant 0 : index
    %c0_90 = arith.constant 0 : index
    %157 = vector.load %arg6[%c0_88, %c0_89, %c0_90] : memref<2x8x32xf32, #tpu.memory_space<vmem>>, vector<2x8x32xf32>
    tpu.vector_store %arg6[%c0_88, %c0_89, %c0_90], %156 {strides = array<i32>} : memref<2x8x32xf32, #tpu.memory_space<vmem>>, vector<2x8x32xf32>,
    return
  }
  func.func @transform_0(%arg0: i32) -> (i32, i32, i32) {
    %c0_i32 = arith.constant 0 : i32
    %c0_i32_0 = arith.constant 0 : i32
    %c0_i32_1 = arith.constant 0 : i32
    return %arg0, %c0_i32, %c0_i32_0 : i32, i32, i32
  }
  func.func @transform_1(%arg0: i32) -> (i32, i32) {
    %c0_i32 = arith.constant 0 : i32
    %c0_i32_0 = arith.constant 0 : i32
    %c0_i32_1 = arith.constant 0 : i32
    return %c0_i32, %c0_i32_0 : i32, i32
  }
  func.func @transform_2(%arg0: i32) -> (i32, i32) {
    %c0_i32 = arith.constant 0 : i32
    %c0_i32_0 = arith.constant 0 : i32
    %c0_i32_1 = arith.constant 0 : i32
    return %c0_i32, %c0_i32_0 : i32, i32
  }
  func.func @transform_3(%arg0: i32) -> (i32, i32) {
    %c0_i32 = arith.constant 0 : i32
    %c0_i32_0 = arith.constant 0 : i32
    %c0_i32_1 = arith.constant 0 : i32
    return %c0_i32, %c0_i32_0 : i32, i32
  }
  func.func @transform_4(%arg0: i32) -> (i32, i32) {
    %c0_i32 = arith.constant 0 : i32
    %c0_i32_0 = arith.constant 0 : i32
    %c0_i32_1 = arith.constant 0 : i32
    return %c0_i32, %c0_i32_0 : i32, i32
  }
  func.func @transform_5(%arg0: i32) -> (i32, i32, i32) {
    %c0_i32 = arith.constant 0 : i32
    %c0_i32_0 = arith.constant 0 : i32
    %c0_i32_1 = arith.constant 0 : i32
    return %arg0, %c0_i32, %c0_i32_0 : i32, i32, i32
  }
}

</mosaic_0001>

<llo_original>
// kernel: tpu_custom_call.1
$region0: #{tpu_custom_call.1}
  #allocation0 [shape = 'u32[]', space=smem, size = 0x4, offset = 0x4, fixed_abs, tag = 'smem constant byte address 0x4 - core index']
  #allocation1 [shape = 'u32[144,128]{1,0:T(1,128)}', space=vmem, size = 0x12000, scoped, tag = 'internal scratch']
  #allocation2 [shape = 'bf16[16,96]{1,0:T(16,128)(2,1)}', space=vmem, size = 0x1000, scoped, tag = 'scratch operand']
  #allocation3 [shape = 'bf16[16,32]{1,0:T(16,128)(2,1)}', space=vmem, size = 0x1000, scoped, tag = 'scratch operand']
  %s0 = inlined_call_operand.hbm [shape: f32[2,8,32], index: 0, kind: input, shape index: {}]
  %s1 = inlined_call_operand.hbm [shape: bf16[32,96], index: 1, kind: input, shape index: {}]
  %s2 = inlined_call_operand.vmem [shape: f32[1,96], index: 2, kind: input, shape index: {}]
  %s3 = inlined_call_operand.hbm [shape: bf16[32,32], index: 3, kind: input, shape index: {}]
  %s4 = inlined_call_operand.vmem [shape: f32[1,32], index: 4, kind: input, shape index: {}]
  %s5 = inlined_call_operand.hbm [shape: f32[2,8,32], index: 5, kind: output, shape index: {}]
  %s6 = sld [smem:[#allocation0]]
  $region42: #{tpu_custom_call.1} parent=0
    _
  %s8 = ssub.s32 1, %s6
  %s9 = scalar_select 0, %s8, %s6
  $region1: #{tpu_custom_call.1} parent=0
    #allocation4 [shape = 'u8[8192]{0}', space=vmem, size = 0x2000, scoped, tag = 'input window, operand 0, single buffered']
    #allocation5 [shape = 's32[1]{0}', space=sflag, size = 0x4, scoped, tag = 'scoped memory for tpu_custom_call.1']
    #allocation6 [shape = 's32[1]{0}', space=sflag, size = 0x4, scoped, tag = 'scoped memory for tpu_custom_call.1']
    #allocation7 [shape = 'u8[8192]{0}', space=vmem, size = 0x2000, scoped, tag = 'input window, operand 1, single buffered']
    #allocation8 [shape = 's32[1]{0}', space=sflag, size = 0x4, scoped, tag = 'scoped memory for tpu_custom_call.1']
    #allocation9 [shape = 'u8[8192]{0}', space=vmem, size = 0x2000, scoped, tag = 'input window, operand 3, single buffered']
    #allocation10 [shape = 'u8[8192]{0}', space=vmem, size = 0x2000, scoped, tag = 'output window, operand 0, single buffered']
    %10 = vsyncpa [#allocation5], 0
    %11 = vsyncpa [#allocation8], 0
    %12 = vsyncpa [#allocation6], 0
    // Predicated region
    $region2: #{tpu_custom_call.1} parent=1 // pred_check
      _
    $region3: #{tpu_custom_call.1} parent=1 // pred_check_branch
      %14 = sbr.rel (0) target = $region5
    $region4: #{tpu_custom_call.1} parent=1 // pred_region
      %s16 = ssub.s32 256, 256
      %17 = vsyncadd [#allocation5], %s16
      %s18 = sshll.u32 [#allocation4], 4
      %s19 = int_to_ptr.vmem [resolvable:$true] %s18
      %24 = dma.hbm_to_vmem [thread:$0]  %s0, 256, %s19, [#allocation5], 128, 128, 8
    $region5: #{tpu_custom_call.1} parent=1 // pred_fallthru
      _
    // Predicated region
    $region6: #{tpu_custom_call.1} parent=1 // pred_check
      _
    $region7: #{tpu_custom_call.1} parent=1 // pred_check_branch
      %26 = sbr.rel (0) target = $region9
    $region8: #{tpu_custom_call.1} parent=1 // pred_region
      %s28 = ssub.s32 256, 256
      %29 = vsyncadd [#allocation8], %s28
      %s30 = sshll.u32 [#allocation7], 4
      %s31 = int_to_ptr.vmem [resolvable:$true] %s30
      %36 = dma.hbm_to_vmem [thread:$0]  %s1, 256, %s31, [#allocation8], 64, 64, 4
    $region9: #{tpu_custom_call.1} parent=1 // pred_fallthru
      _
    // Predicated region
    $region10: #{tpu_custom_call.1} parent=1 // pred_check
      _
    $region11: #{tpu_custom_call.1} parent=1 // pred_check_branch
      %38 = sbr.rel (0) target = $region13
    $region12: #{tpu_custom_call.1} parent=1 // pred_region
      _
    $region13: #{tpu_custom_call.1} parent=1 // pred_fallthru
      _
    // Predicated region
    $region14: #{tpu_custom_call.1} parent=1 // pred_check
      _
    $region15: #{tpu_custom_call.1} parent=1 // pred_check_branch
      %40 = sbr.rel (0) target = $region17
    $region16: #{tpu_custom_call.1} parent=1 // pred_region
      %s42 = ssub.s32 256, 256
      %43 = vsyncadd [#allocation8], %s42
      %s44 = sshll.u32 [#allocation9], 4
      %s45 = int_to_ptr.vmem [resolvable:$true] %s44
      %50 = dma.hbm_to_vmem [thread:$0]  %s3, 256, %s45, [#allocation8], 64, 64, 4
    $region17: #{tpu_custom_call.1} parent=1 // pred_fallthru
      _
    // Predicated region
    $region18: #{tpu_custom_call.1} parent=1 // pred_check
      _
    $region19: #{tpu_custom_call.1} parent=1 // pred_check_branch
      %52 = sbr.rel (0) target = $region21
    $region20: #{tpu_custom_call.1} parent=1 // pred_region
      _
    $region21: #{tpu_custom_call.1} parent=1 // pred_fallthru
      _
    // Predicated region
    $region22: #{tpu_custom_call.1} parent=1 // pred_check
      _
    $region23: #{tpu_custom_call.1} parent=1 // pred_check_branch
      %54 = sbr.rel (0) target = $region25
    $region24: #{tpu_custom_call.1} parent=1 // pred_region
      %55 = dma.done [#allocation5], 256
    $region25: #{tpu_custom_call.1} parent=1 // pred_fallthru
      _
    // Predicated region
    $region26: #{tpu_custom_call.1} parent=1 // pred_check
      _
    $region27: #{tpu_custom_call.1} parent=1 // pred_check_branch
      %57 = sbr.rel (0) target = $region29
    $region28: #{tpu_custom_call.1} parent=1 // pred_region
      %58 = dma.done [#allocation8], 256
    $region29: #{tpu_custom_call.1} parent=1 // pred_fallthru
      _
    // Predicated region
    $region30: #{tpu_custom_call.1} parent=1 // pred_check
      _
    $region31: #{tpu_custom_call.1} parent=1 // pred_check_branch
      %60 = sbr.rel (0) target = $region33
    $region32: #{tpu_custom_call.1} parent=1 // pred_region
      %61 = dma.done [#allocation8], 256
    $region33: #{tpu_custom_call.1} parent=1 // pred_fallthru
      _
    %v63 = vld [vmem:[#allocation4] sm:$0xff]
    %v64 = vld [vmem:[#allocation4 + $0x8] sm:$0xff]
    %v65 = vpack.c.bf16 %v64, %v63
    %v66 = vld [vmem:[#allocation7] sm:$0xf]
    %v67 = vld [vmem:[#allocation7 + $0x4] sm:$0xf]
    %v68 = vld [vmem:[#allocation7 + $0x8] sm:$0xf]
    %v69 = vld [vmem:[#allocation7 + $0xc] sm:$0xf]
    %v70 = vld [vmem:[%s2] sm:$0x1]
    %v72 = vlaneseq
    %v73 = vshrl.u32 %v72, 7
    %v74 = vsub.s32 0, %v73
    %v75 = vrot.slane %v70, %v74
    %v81 = vunpack.c.l.b16 %v66
    %v82 = vunpack.c.l.b16 %v67
    %v83 = vunpack.c.l.b16 %v68
    %v84 = vunpack.c.l.b16 %v69
    %v85 = vpack.c.b16 %v82, %v81
    %v86 = vpack.c.b16 %v84, %v83
    %vm89 = vcmask 261120
    %v91 = vsel %vm89, %v65, 0
    %93 = vmatprep.subr.bf16.mxu0 0
    %94 = vmatpush1.bf16.msra.mxu0 %v85
    %95 = vmatprep.subr.bf16.mxu0 0
    %96 = vmatpush1.bf16.msra.mxu0 %v86
    %97 = vmatprep.subr.bf16.mxu0 0
    %98 = vmatpush1.bf16.msra.mxu0 0
    %99 = vmatprep.subr.bf16.mxu0 0
    %100 = vmatpush1.bf16.msra.mxu0 0
    %101 = vmatprep.subr.bf16.mxu0 0
    %102 = vmatpush1.bf16.msra.mxu0 0
    %103 = vmatprep.subr.bf16.mxu0 0
    %104 = vmatpush1.bf16.msra.mxu0 0
    %105 = vmatprep.subr.bf16.mxu0 0
    %106 = vmatpush1.bf16.msra.mxu0 0
    %107 = vmatprep.subr.bf16.mxu0 0
    %108 = vmatpush1.bf16.msra.mxu0 0
    %109 = vmatprep.subr.bf16.mxu0 0
    %110 = vmatpush1.bf16.msra.mxu0 0
    %111 = vmatprep.subr.bf16.mxu0 0
    %112 = vmatpush1.bf16.msra.mxu0 0
    %113 = vmatprep.subr.bf16.mxu0 0
    %114 = vmatpush1.bf16.msra.mxu0 0
    %115 = vmatprep.subr.bf16.mxu0 0
    %116 = vmatpush1.bf16.msra.mxu0 0
    %117 = vmatprep.subr.bf16.mxu0 0
    %118 = vmatpush1.bf16.msra.mxu0 0
    %119 = vmatprep.subr.bf16.mxu0 0
    %120 = vmatpush1.bf16.msra.mxu0 0
    %121 = vmatprep.subr.bf16.mxu0 0
    %122 = vmatpush1.bf16.msra.mxu0 0
    %123 = vmatprep.subr.bf16.mxu0 0
    %124 = vmatpush1.bf16.msra.mxu0 0
    %125 = vmatprep.mubr.bf16.mxu0 0
    %126 = vmatmul.mubr.bf16.gmra.mrb[0].mxu0 %v91
    %v127 = vpop.f32.mrb[0].mxu0
    %v128 = vadd.f32 %v75, %v127
    %v129 = vpop.f32.mrb[0].mxu0
    %v130 = vpop.f32.mrb[0].mxu0
    %v131 = vadd.f32 %v75, %v130
    %v132 = vpop.f32.mrb[0].mxu0
    %133 = vdwg.mxu0
    %v134 = vpack.c.bf16 %v131, %v128
    %vm135 = vcmask 785408
    %136 = vst.msk [vmem:[#allocation2] sm:$0xff] %vm135, %v134
    %v137 = vld [vmem:[#allocation2] sm:$0xf]
    %139 = vrot.lane.b32.xlu0 %v137, 96
    %v140 = vpop.permute.xlu0 %139
    %vm141 = vcmask 64512
    %v143 = vsel %vm141, %v137, 0
    %v146 = vsel %vm141, %v140, 0
    %148 = vmatprep.subr.bf16.mxu0 0
    %149 = vmatpush1.bf16.xpose.msra.mxu0 %v146
    %150 = vmatprep.subr.bf16.mxu0 0
    %151 = vmatpush1.bf16.xpose.msra.mxu0 0
    %152 = vmatprep.subr.bf16.mxu0 0
    %153 = vmatpush1.bf16.xpose.msra.mxu0 0
    %154 = vmatprep.subr.bf16.mxu0 0
    %155 = vmatpush1.bf16.xpose.msra.mxu0 0
    %156 = vmatprep.subr.bf16.mxu0 0
    %157 = vmatpush1.bf16.xpose.msra.mxu0 0
    %158 = vmatprep.subr.bf16.mxu0 0
    %159 = vmatpush1.bf16.xpose.msra.mxu0 0
    %160 = vmatprep.subr.bf16.mxu0 0
    %161 = vmatpush1.bf16.xpose.msra.mxu0 0
    %162 = vmatprep.subr.bf16.mxu0 0
    %163 = vmatpush1.bf16.xpose.msra.mxu0 0
    %164 = vmatprep.subr.bf16.mxu0 0
    %165 = vmatpush1.bf16.xpose.msra.mxu0 0
    %166 = vmatprep.subr.bf16.mxu0 0
    %167 = vmatpush1.bf16.xpose.msra.mxu0 0
    %168 = vmatprep.subr.bf16.mxu0 0
    %169 = vmatpush1.bf16.xpose.msra.mxu0 0
    %170 = vmatprep.subr.bf16.mxu0 0
    %171 = vmatpush1.bf16.xpose.msra.mxu0 0
    %172 = vmatprep.subr.bf16.mxu0 0
    %173 = vmatpush1.bf16.xpose.msra.mxu0 0
    %174 = vmatprep.subr.bf16.mxu0 0
    %175 = vmatpush1.bf16.xpose.msra.mxu0 0
    %176 = vmatprep.subr.bf16.mxu0 0
    %177 = vmatpush1.bf16.xpose.msra.mxu0 0
    %178 = vmatprep.subr.bf16.mxu0 0
    %179 = vmatpush1.bf16.xpose.msra.mxu0 0
    %180 = vmatprep.mubr.bf16.mxu0 0
    %181 = vmatmul.mubr.bf16.gmra.mrb[0].mxu0 %v143
    %v182 = vpop.f32.mrb[0].mxu0
    %v183 = vadd.f32 0.0, %v182
    %v184 = vpop.f32.mrb[0].mxu0
    %v185 = vpop.f32.mrb[0].mxu0
    %v186 = vpop.f32.mrb[0].mxu0
    %187 = vdwg.mxu0
    %v188 = vsel %vm141, %v183, -inf
    %189 = vmax.xlane.f32.xlu0 %v188
    %v190 = vpop.xlane.xlu0 %189
    %v191 = vsub.f32 %v183, %v190
    %v192 = vmul.f32 %v191, 1.442695
    %v193 = vpow.pop %v192
    %v194 = vsel %vm141, %v193, 0.0
    %195 = vadd.xlane.f32.xlu0 %v194
    %v196 = vpop.xlane.xlu0 %195
    %v197 = vpack.c.bf16 %v193, %v193
    %198 = vrot.lane.b32.xlu0 %v137, 64
    %v199 = vpop.permute.xlu0 %198
    %v201 = vsel %vm141, %v197, 0
    %vm203 = vcmask 1043456
    %v205 = vsel %vm203, %v199, 0
    %207 = vmatprep.subr.bf16.mxu0 0
    %208 = vmatpush1.bf16.msra.mxu0 %v205
    %209 = vmatprep.subr.bf16.mxu0 0
    %210 = vmatpush1.bf16.msra.mxu0 0
    %211 = vmatprep.subr.bf16.mxu0 0
    %212 = vmatpush1.bf16.msra.mxu0 0
    %213 = vmatprep.subr.bf16.mxu0 0
    %214 = vmatpush1.bf16.msra.mxu0 0
    %215 = vmatprep.subr.bf16.mxu0 0
    %216 = vmatpush1.bf16.msra.mxu0 0
    %217 = vmatprep.subr.bf16.mxu0 0
    %218 = vmatpush1.bf16.msra.mxu0 0
    %219 = vmatprep.subr.bf16.mxu0 0
    %220 = vmatpush1.bf16.msra.mxu0 0
    %221 = vmatprep.subr.bf16.mxu0 0
    %222 = vmatpush1.bf16.msra.mxu0 0
    %223 = vmatprep.subr.bf16.mxu0 0
    %224 = vmatpush1.bf16.msra.mxu0 0
    %225 = vmatprep.subr.bf16.mxu0 0
    %226 = vmatpush1.bf16.msra.mxu0 0
    %227 = vmatprep.subr.bf16.mxu0 0
    %228 = vmatpush1.bf16.msra.mxu0 0
    %229 = vmatprep.subr.bf16.mxu0 0
    %230 = vmatpush1.bf16.msra.mxu0 0
    %231 = vmatprep.subr.bf16.mxu0 0
    %232 = vmatpush1.bf16.msra.mxu0 0
    %233 = vmatprep.subr.bf16.mxu0 0
    %234 = vmatpush1.bf16.msra.mxu0 0
    %235 = vmatprep.subr.bf16.mxu0 0
    %236 = vmatpush1.bf16.msra.mxu0 0
    %237 = vmatprep.subr.bf16.mxu0 0
    %238 = vmatpush1.bf16.msra.mxu0 0
    %239 = vmatprep.mubr.bf16.mxu0 0
    %240 = vmatmul.mubr.bf16.gmra.mrb[0].mxu0 %v201
    %v241 = vpop.f32.mrb[0].mxu0
    %v242 = vadd.f32 0.0, %v241
    %v243 = vpop.f32.mrb[0].mxu0
    %v244 = vpop.f32.mrb[0].mxu0
    %v245 = vpop.f32.mrb[0].mxu0
    %246 = vdwg.mxu0
    %v247 = vrcp.pop %v196
    %v248 = vmul.f32 %v242, %v247
    %v249 = vpack.c.bf16 %v248, %v248
    %250 = vrot.lane.b32.xlu0 %v137, 120
    %v251 = vpop.permute.xlu0 %250
    %252 = vrot.lane.b32.xlu0 %v137, 88
    %v253 = vpop.permute.xlu0 %252
    %v255 = vsel %vm141, %v251, 0
    %v258 = vsel %vm141, %v253, 0
    %260 = vmatprep.subr.bf16.mxu0 0
    %261 = vmatpush1.bf16.xpose.msra.mxu0 %v258
    %262 = vmatprep.subr.bf16.mxu0 0
    %263 = vmatpush1.bf16.xpose.msra.mxu0 0
    %264 = vmatprep.subr.bf16.mxu0 0
    %265 = vmatpush1.bf16.xpose.msra.mxu0 0
    %266 = vmatprep.subr.bf16.mxu0 0
    %267 = vmatpush1.bf16.xpose.msra.mxu0 0
    %268 = vmatprep.subr.bf16.mxu0 0
    %269 = vmatpush1.bf16.xpose.msra.mxu0 0
    %270 = vmatprep.subr.bf16.mxu0 0
    %271 = vmatpush1.bf16.xpose.msra.mxu0 0
    %272 = vmatprep.subr.bf16.mxu0 0
    %273 = vmatpush1.bf16.xpose.msra.mxu0 0
    %274 = vmatprep.subr.bf16.mxu0 0
    %275 = vmatpush1.bf16.xpose.msra.mxu0 0
    %276 = vmatprep.subr.bf16.mxu0 0
    %277 = vmatpush1.bf16.xpose.msra.mxu0 0
    %278 = vmatprep.subr.bf16.mxu0 0
    %279 = vmatpush1.bf16.xpose.msra.mxu0 0
    %280 = vmatprep.subr.bf16.mxu0 0
    %281 = vmatpush1.bf16.xpose.msra.mxu0 0
    %282 = vmatprep.subr.bf16.mxu0 0
    %283 = vmatpush1.bf16.xpose.msra.mxu0 0
    %284 = vmatprep.subr.bf16.mxu0 0
    %285 = vmatpush1.bf16.xpose.msra.mxu0 0
    %286 = vmatprep.subr.bf16.mxu0 0
    %287 = vmatpush1.bf16.xpose.msra.mxu0 0
    %288 = vmatprep.subr.bf16.mxu0 0
    %289 = vmatpush1.bf16.xpose.msra.mxu0 0
    %290 = vmatprep.subr.bf16.mxu0 0
    %291 = vmatpush1.bf16.xpose.msra.mxu0 0
    %292 = vmatprep.mubr.bf16.mxu0 0
    %293 = vmatmul.mubr.bf16.gmra.mrb[0].mxu0 %v255
    %v294 = vpop.f32.mrb[0].mxu0
    %v295 = vadd.f32 0.0, %v294
    %v296 = vpop.f32.mrb[0].mxu0
    %v297 = vpop.f32.mrb[0].mxu0
    %v298 = vpop.f32.mrb[0].mxu0
    %299 = vdwg.mxu0
    %v300 = vsel %vm141, %v295, -inf
    %301 = vmax.xlane.f32.xlu0 %v300
    %v302 = vpop.xlane.xlu0 %301
    %v303 = vsub.f32 %v295, %v302
    %v304 = vmul.f32 %v303, 1.442695
    %v305 = vpow.pop %v304
    %v306 = vsel %vm141, %v305, 0.0
    %307 = vadd.xlane.f32.xlu0 %v306
    %v308 = vpop.xlane.xlu0 %307
    %v309 = vpack.c.bf16 %v305, %v305
    %310 = vrot.lane.b32.xlu0 %v137, 56
    %v311 = vpop.permute.xlu0 %310
    %v313 = vsel %vm141, %v309, 0
    %v316 = vsel %vm203, %v311, 0
    %318 = vmatprep.subr.bf16.mxu0 0
    %319 = vmatpush1.bf16.msra.mxu0 %v316
    %320 = vmatprep.subr.bf16.mxu0 0
    %321 = vmatpush1.bf16.msra.mxu0 0
    %322 = vmatprep.subr.bf16.mxu0 0
    %323 = vmatpush1.bf16.msra.mxu0 0
    %324 = vmatprep.subr.bf16.mxu0 0
    %325 = vmatpush1.bf16.msra.mxu0 0
    %326 = vmatprep.subr.bf16.mxu0 0
    %327 = vmatpush1.bf16.msra.mxu0 0
    %328 = vmatprep.subr.bf16.mxu0 0
    %329 = vmatpush1.bf16.msra.mxu0 0
    %330 = vmatprep.subr.bf16.mxu0 0
    %331 = vmatpush1.bf16.msra.mxu0 0
    %332 = vmatprep.subr.bf16.mxu0 0
    %333 = vmatpush1.bf16.msra.mxu0 0
    %334 = vmatprep.subr.bf16.mxu0 0
    %335 = vmatpush1.bf16.msra.mxu0 0
    %336 = vmatprep.subr.bf16.mxu0 0
    %337 = vmatpush1.bf16.msra.mxu0 0
    %338 = vmatprep.subr.bf16.mxu0 0
    %339 = vmatpush1.bf16.msra.mxu0 0
    %340 = vmatprep.subr.bf16.mxu0 0
    %341 = vmatpush1.bf16.msra.mxu0 0
    %342 = vmatprep.subr.bf16.mxu0 0
    %343 = vmatpush1.bf16.msra.mxu0 0
    %344 = vmatprep.subr.bf16.mxu0 0
    %345 = vmatpush1.bf16.msra.mxu0 0
    %346 = vmatprep.subr.bf16.mxu0 0
    %347 = vmatpush1.bf16.msra.mxu0 0
    %348 = vmatprep.subr.bf16.mxu0 0
    %349 = vmatpush1.bf16.msra.mxu0 0
    %350 = vmatprep.mubr.bf16.mxu0 0
    %351 = vmatmul.mubr.bf16.gmra.mrb[0].mxu0 %v313
    %v352 = vpop.f32.mrb[0].mxu0
    %v353 = vadd.f32 0.0, %v352
    %v354 = vpop.f32.mrb[0].mxu0
    %v355 = vpop.f32.mrb[0].mxu0
    %v356 = vpop.f32.mrb[0].mxu0
    %357 = vdwg.mxu0
    %v358 = vrcp.pop %v308
    %v359 = vmul.f32 %v353, %v358
    %v360 = vpack.c.bf16 %v359, %v359
    %361 = vrot.lane.b32.xlu0 %v137, 112
    %v362 = vpop.permute.xlu0 %361
    %363 = vrot.lane.b32.xlu0 %v137, 80
    %v364 = vpop.permute.xlu0 %363
    %v366 = vsel %vm141, %v362, 0
    %v369 = vsel %vm141, %v364, 0
    %371 = vmatprep.subr.bf16.mxu0 0
    %372 = vmatpush1.bf16.xpose.msra.mxu0 %v369
    %373 = vmatprep.subr.bf16.mxu0 0
    %374 = vmatpush1.bf16.xpose.msra.mxu0 0
    %375 = vmatprep.subr.bf16.mxu0 0
    %376 = vmatpush1.bf16.xpose.msra.mxu0 0
    %377 = vmatprep.subr.bf16.mxu0 0
    %378 = vmatpush1.bf16.xpose.msra.mxu0 0
    %379 = vmatprep.subr.bf16.mxu0 0
    %380 = vmatpush1.bf16.xpose.msra.mxu0 0
    %381 = vmatprep.subr.bf16.mxu0 0
    %382 = vmatpush1.bf16.xpose.msra.mxu0 0
    %383 = vmatprep.subr.bf16.mxu0 0
    %384 = vmatpush1.bf16.xpose.msra.mxu0 0
    %385 = vmatprep.subr.bf16.mxu0 0
    %386 = vmatpush1.bf16.xpose.msra.mxu0 0
    %387 = vmatprep.subr.bf16.mxu0 0
    %388 = vmatpush1.bf16.xpose.msra.mxu0 0
    %389 = vmatprep.subr.bf16.mxu0 0
    %390 = vmatpush1.bf16.xpose.msra.mxu0 0
    %391 = vmatprep.subr.bf16.mxu0 0
    %392 = vmatpush1.bf16.xpose.msra.mxu0 0
    %393 = vmatprep.subr.bf16.mxu0 0
    %394 = vmatpush1.bf16.xpose.msra.mxu0 0
    %395 = vmatprep.subr.bf16.mxu0 0
    %396 = vmatpush1.bf16.xpose.msra.mxu0 0
    %397 = vmatprep.subr.bf16.mxu0 0
    %398 = vmatpush1.bf16.xpose.msra.mxu0 0
    %399 = vmatprep.subr.bf16.mxu0 0
    %400 = vmatpush1.bf16.xpose.msra.mxu0 0
    %401 = vmatprep.subr.bf16.mxu0 0
    %402 = vmatpush1.bf16.xpose.msra.mxu0 0
    %403 = vmatprep.mubr.bf16.mxu0 0
    %404 = vmatmul.mubr.bf16.gmra.mrb[0].mxu0 %v366
    %v405 = vpop.f32.mrb[0].mxu0
    %v406 = vadd.f32 0.0, %v405
    %v407 = vpop.f32.mrb[0].mxu0
    %v408 = vpop.f32.mrb[0].mxu0
    %v409 = vpop.f32.mrb[0].mxu0
    %410 = vdwg.mxu0
    %v411 = vsel %vm141, %v406, -inf
    %412 = vmax.xlane.f32.xlu0 %v411
    %v413 = vpop.xlane.xlu0 %412
    %v414 = vsub.f32 %v406, %v413
    %v415 = vmul.f32 %v414, 1.442695
    %v416 = vpow.pop %v415
    %v417 = vsel %vm141, %v416, 0.0
    %418 = vadd.xlane.f32.xlu0 %v417
    %v419 = vpop.xlane.xlu0 %418
    %v420 = vpack.c.bf16 %v416, %v416
    %421 = vrot.lane.b32.xlu0 %v137, 48
    %v422 = vpop.permute.xlu0 %421
    %v424 = vsel %vm141, %v420, 0
    %v427 = vsel %vm203, %v422, 0
    %429 = vmatprep.subr.bf16.mxu0 0
    %430 = vmatpush1.bf16.msra.mxu0 %v427
    %431 = vmatprep.subr.bf16.mxu0 0
    %432 = vmatpush1.bf16.msra.mxu0 0
    %433 = vmatprep.subr.bf16.mxu0 0
    %434 = vmatpush1.bf16.msra.mxu0 0
    %435 = vmatprep.subr.bf16.mxu0 0
    %436 = vmatpush1.bf16.msra.mxu0 0
    %437 = vmatprep.subr.bf16.mxu0 0
    %438 = vmatpush1.bf16.msra.mxu0 0
    %439 = vmatprep.subr.bf16.mxu0 0
    %440 = vmatpush1.bf16.msra.mxu0 0
    %441 = vmatprep.subr.bf16.mxu0 0
    %442 = vmatpush1.bf16.msra.mxu0 0
    %443 = vmatprep.subr.bf16.mxu0 0
    %444 = vmatpush1.bf16.msra.mxu0 0
    %445 = vmatprep.subr.bf16.mxu0 0
    %446 = vmatpush1.bf16.msra.mxu0 0
    %447 = vmatprep.subr.bf16.mxu0 0
    %448 = vmatpush1.bf16.msra.mxu0 0
    %449 = vmatprep.subr.bf16.mxu0 0
    %450 = vmatpush1.bf16.msra.mxu0 0
    %451 = vmatprep.subr.bf16.mxu0 0
    %452 = vmatpush1.bf16.msra.mxu0 0
    %453 = vmatprep.subr.bf16.mxu0 0
    %454 = vmatpush1.bf16.msra.mxu0 0
    %455 = vmatprep.subr.bf16.mxu0 0
    %456 = vmatpush1.bf16.msra.mxu0 0
    %457 = vmatprep.subr.bf16.mxu0 0
    %458 = vmatpush1.bf16.msra.mxu0 0
    %459 = vmatprep.subr.bf16.mxu0 0
    %460 = vmatpush1.bf16.msra.mxu0 0
    %461 = vmatprep.mubr.bf16.mxu0 0
    %462 = vmatmul.mubr.bf16.gmra.mrb[0].mxu0 %v424
    %v463 = vpop.f32.mrb[0].mxu0
    %v464 = vadd.f32 0.0, %v463
    %v465 = vpop.f32.mrb[0].mxu0
    %v466 = vpop.f32.mrb[0].mxu0
    %v467 = vpop.f32.mrb[0].mxu0
    %468 = vdwg.mxu0
    %v469 = vrcp.pop %v419
    %v470 = vmul.f32 %v464, %v469
    %v471 = vpack.c.bf16 %v470, %v470
    %472 = vrot.lane.b32.xlu0 %v137, 104
    %v473 = vpop.permute.xlu0 %472
    %474 = vrot.lane.b32.xlu0 %v137, 72
    %v475 = vpop.permute.xlu0 %474
    %v477 = vsel %vm141, %v473, 0
    %v480 = vsel %vm141, %v475, 0
    %482 = vmatprep.subr.bf16.mxu0 0
    %483 = vmatpush1.bf16.xpose.msra.mxu0 %v480
    %484 = vmatprep.subr.bf16.mxu0 0
    %485 = vmatpush1.bf16.xpose.msra.mxu0 0
    %486 = vmatprep.subr.bf16.mxu0 0
    %487 = vmatpush1.bf16.xpose.msra.mxu0 0
    %488 = vmatprep.subr.bf16.mxu0 0
    %489 = vmatpush1.bf16.xpose.msra.mxu0 0
    %490 = vmatprep.subr.bf16.mxu0 0
    %491 = vmatpush1.bf16.xpose.msra.mxu0 0
    %492 = vmatprep.subr.bf16.mxu0 0
    %493 = vmatpush1.bf16.xpose.msra.mxu0 0
    %494 = vmatprep.subr.bf16.mxu0 0
    %495 = vmatpush1.bf16.xpose.msra.mxu0 0
    %496 = vmatprep.subr.bf16.mxu0 0
    %497 = vmatpush1.bf16.xpose.msra.mxu0 0
    %498 = vmatprep.subr.bf16.mxu0 0
    %499 = vmatpush1.bf16.xpose.msra.mxu0 0
    %500 = vmatprep.subr.bf16.mxu0 0
    %501 = vmatpush1.bf16.xpose.msra.mxu0 0
    %502 = vmatprep.subr.bf16.mxu0 0
    %503 = vmatpush1.bf16.xpose.msra.mxu0 0
    %504 = vmatprep.subr.bf16.mxu0 0
    %505 = vmatpush1.bf16.xpose.msra.mxu0 0
    %506 = vmatprep.subr.bf16.mxu0 0
    %507 = vmatpush1.bf16.xpose.msra.mxu0 0
    %508 = vmatprep.subr.bf16.mxu0 0
    %509 = vmatpush1.bf16.xpose.msra.mxu0 0
    %510 = vmatprep.subr.bf16.mxu0 0
    %511 = vmatpush1.bf16.xpose.msra.mxu0 0
    %512 = vmatprep.subr.bf16.mxu0 0
    %513 = vmatpush1.bf16.xpose.msra.mxu0 0
    %514 = vmatprep.mubr.bf16.mxu0 0
    %515 = vmatmul.mubr.bf16.gmra.mrb[0].mxu0 %v477
    %v516 = vpop.f32.mrb[0].mxu0
    %v517 = vadd.f32 0.0, %v516
    %v518 = vpop.f32.mrb[0].mxu0
    %v519 = vpop.f32.mrb[0].mxu0
    %v520 = vpop.f32.mrb[0].mxu0
    %521 = vdwg.mxu0
    %v522 = vsel %vm141, %v517, -inf
    %523 = vmax.xlane.f32.xlu0 %v522
    %v524 = vpop.xlane.xlu0 %523
    %v525 = vsub.f32 %v517, %v524
    %v526 = vmul.f32 %v525, 1.442695
    %v527 = vpow.pop %v526
    %v528 = vsel %vm141, %v527, 0.0
    %529 = vadd.xlane.f32.xlu0 %v528
    %v530 = vpop.xlane.xlu0 %529
    %v531 = vpack.c.bf16 %v527, %v527
    %532 = vrot.lane.b32.xlu0 %v137, 40
    %v533 = vpop.permute.xlu0 %532
    %v535 = vsel %vm141, %v531, 0
    %v538 = vsel %vm203, %v533, 0
    %540 = vmatprep.subr.bf16.mxu0 0
    %541 = vmatpush1.bf16.msra.mxu0 %v538
    %542 = vmatprep.subr.bf16.mxu0 0
    %543 = vmatpush1.bf16.msra.mxu0 0
    %544 = vmatprep.subr.bf16.mxu0 0
    %545 = vmatpush1.bf16.msra.mxu0 0
    %546 = vmatprep.subr.bf16.mxu0 0
    %547 = vmatpush1.bf16.msra.mxu0 0
    %548 = vmatprep.subr.bf16.mxu0 0
    %549 = vmatpush1.bf16.msra.mxu0 0
    %550 = vmatprep.subr.bf16.mxu0 0
    %551 = vmatpush1.bf16.msra.mxu0 0
    %552 = vmatprep.subr.bf16.mxu0 0
    %553 = vmatpush1.bf16.msra.mxu0 0
    %554 = vmatprep.subr.bf16.mxu0 0
    %555 = vmatpush1.bf16.msra.mxu0 0
    %556 = vmatprep.subr.bf16.mxu0 0
    %557 = vmatpush1.bf16.msra.mxu0 0
    %558 = vmatprep.subr.bf16.mxu0 0
    %559 = vmatpush1.bf16.msra.mxu0 0
    %560 = vmatprep.subr.bf16.mxu0 0
    %561 = vmatpush1.bf16.msra.mxu0 0
    %562 = vmatprep.subr.bf16.mxu0 0
    %563 = vmatpush1.bf16.msra.mxu0 0
    %564 = vmatprep.subr.bf16.mxu0 0
    %565 = vmatpush1.bf16.msra.mxu0 0
    %566 = vmatprep.subr.bf16.mxu0 0
    %567 = vmatpush1.bf16.msra.mxu0 0
    %568 = vmatprep.subr.bf16.mxu0 0
    %569 = vmatpush1.bf16.msra.mxu0 0
    %570 = vmatprep.subr.bf16.mxu0 0
    %571 = vmatpush1.bf16.msra.mxu0 0
    %572 = vmatprep.mubr.bf16.mxu0 0
    %573 = vmatmul.mubr.bf16.gmra.mrb[0].mxu0 %v535
    %v574 = vpop.f32.mrb[0].mxu0
    %v575 = vadd.f32 0.0, %v574
    %v576 = vpop.f32.mrb[0].mxu0
    %v577 = vpop.f32.mrb[0].mxu0
    %v578 = vpop.f32.mrb[0].mxu0
    %579 = vdwg.mxu0
    %v580 = vrcp.pop %v530
    %v581 = vmul.f32 %v575, %v580
    %v582 = vpack.c.bf16 %v581, %v581
    %584 = vrot.lane.b32.xlu0 %v360, 8
    %v585 = vpop.permute.xlu0 %584
    %587 = vrot.lane.b32.xlu0 %v471, 16
    %v588 = vpop.permute.xlu0 %587
    %590 = vrot.lane.b32.xlu0 %v582, 24
    %v591 = vpop.permute.xlu0 %590
    %v594 = vsel %vm141, %v249, %v585
    %vm595 = vcmask 130048
    %v597 = vsel %vm595, %v594, %v588
    %vm598 = vcmask 195584
    %v600 = vsel %vm598, %v597, %v591
    %vm602 = vcmask 257024
    %603 = vst.msk [vmem:[#allocation3] sm:$0xf] %vm602, %v600
    %v604 = vld [vmem:[#allocation2] sm:$0xf0]
    %v606 = vrot.slane %v604, 4
    %607 = vrot.lane.b32.xlu0 %v606, 96
    %v608 = vpop.permute.xlu0 %607
    %v610 = vsel %vm141, %v606, 0
    %v613 = vsel %vm141, %v608, 0
    %615 = vmatprep.subr.bf16.mxu0 0
    %616 = vmatpush1.bf16.xpose.msra.mxu0 %v613
    %617 = vmatprep.subr.bf16.mxu0 0
    %618 = vmatpush1.bf16.xpose.msra.mxu0 0
    %619 = vmatprep.subr.bf16.mxu0 0
    %620 = vmatpush1.bf16.xpose.msra.mxu0 0
    %621 = vmatprep.subr.bf16.mxu0 0
    %622 = vmatpush1.bf16.xpose.msra.mxu0 0
    %623 = vmatprep.subr.bf16.mxu0 0
    %624 = vmatpush1.bf16.xpose.msra.mxu0 0
    %625 = vmatprep.subr.bf16.mxu0 0
    %626 = vmatpush1.bf16.xpose.msra.mxu0 0
    %627 = vmatprep.subr.bf16.mxu0 0
    %628 = vmatpush1.bf16.xpose.msra.mxu0 0
    %629 = vmatprep.subr.bf16.mxu0 0
    %630 = vmatpush1.bf16.xpose.msra.mxu0 0
    %631 = vmatprep.subr.bf16.mxu0 0
    %632 = vmatpush1.bf16.xpose.msra.mxu0 0
    %633 = vmatprep.subr.bf16.mxu0 0
    %634 = vmatpush1.bf16.xpose.msra.mxu0 0
    %635 = vmatprep.subr.bf16.mxu0 0
    %636 = vmatpush1.bf16.xpose.msra.mxu0 0
    %637 = vmatprep.subr.bf16.mxu0 0
    %638 = vmatpush1.bf16.xpose.msra.mxu0 0
    %639 = vmatprep.subr.bf16.mxu0 0
    %640 = vmatpush1.bf16.xpose.msra.mxu0 0
    %641 = vmatprep.subr.bf16.mxu0 0
    %642 = vmatpush1.bf16.xpose.msra.mxu0 0
    %643 = vmatprep.subr.bf16.mxu0 0
    %644 = vmatpush1.bf16.xpose.msra.mxu0 0
    %645 = vmatprep.subr.bf16.mxu0 0
    %646 = vmatpush1.bf16.xpose.msra.mxu0 0
    %647 = vmatprep.mubr.bf16.mxu0 0
    %648 = vmatmul.mubr.bf16.gmra.mrb[0].mxu0 %v610
    %v649 = vpop.f32.mrb[0].mxu0
    %v650 = vadd.f32 0.0, %v649
    %v651 = vpop.f32.mrb[0].mxu0
    %v652 = vpop.f32.mrb[0].mxu0
    %v653 = vpop.f32.mrb[0].mxu0
    %654 = vdwg.mxu0
    %v655 = vsel %vm141, %v650, -inf
    %656 = vmax.xlane.f32.xlu0 %v655
    %v657 = vpop.xlane.xlu0 %656
    %v658 = vsub.f32 %v650, %v657
    %v659 = vmul.f32 %v658, 1.442695
    %v660 = vpow.pop %v659
    %v661 = vsel %vm141, %v660, 0.0
    %662 = vadd.xlane.f32.xlu0 %v661
    %v663 = vpop.xlane.xlu0 %662
    %v664 = vpack.c.bf16 %v660, %v660
    %665 = vrot.lane.b32.xlu0 %v606, 64
    %v666 = vpop.permute.xlu0 %665
    %v668 = vsel %vm141, %v664, 0
    %v671 = vsel %vm203, %v666, 0
    %673 = vmatprep.subr.bf16.mxu0 0
    %674 = vmatpush1.bf16.msra.mxu0 %v671
    %675 = vmatprep.subr.bf16.mxu0 0
    %676 = vmatpush1.bf16.msra.mxu0 0
    %677 = vmatprep.subr.bf16.mxu0 0
    %678 = vmatpush1.bf16.msra.mxu0 0
    %679 = vmatprep.subr.bf16.mxu0 0
    %680 = vmatpush1.bf16.msra.mxu0 0
    %681 = vmatprep.subr.bf16.mxu0 0
    %682 = vmatpush1.bf16.msra.mxu0 0
    %683 = vmatprep.subr.bf16.mxu0 0
    %684 = vmatpush1.bf16.msra.mxu0 0
    %685 = vmatprep.subr.bf16.mxu0 0
    %686 = vmatpush1.bf16.msra.mxu0 0
    %687 = vmatprep.subr.bf16.mxu0 0
    %688 = vmatpush1.bf16.msra.mxu0 0
    %689 = vmatprep.subr.bf16.mxu0 0
    %690 = vmatpush1.bf16.msra.mxu0 0
    %691 = vmatprep.subr.bf16.mxu0 0
    %692 = vmatpush1.bf16.msra.mxu0 0
    %693 = vmatprep.subr.bf16.mxu0 0
    %694 = vmatpush1.bf16.msra.mxu0 0
    %695 = vmatprep.subr.bf16.mxu0 0
    %696 = vmatpush1.bf16.msra.mxu0 0
    %697 = vmatprep.subr.bf16.mxu0 0
    %698 = vmatpush1.bf16.msra.mxu0 0
    %699 = vmatprep.subr.bf16.mxu0 0
    %700 = vmatpush1.bf16.msra.mxu0 0
    %701 = vmatprep.subr.bf16.mxu0 0
    %702 = vmatpush1.bf16.msra.mxu0 0
    %703 = vmatprep.subr.bf16.mxu0 0
    %704 = vmatpush1.bf16.msra.mxu0 0
    %705 = vmatprep.mubr.bf16.mxu0 0
    %706 = vmatmul.mubr.bf16.gmra.mrb[0].mxu0 %v668
    %v707 = vpop.f32.mrb[0].mxu0
    %v708 = vadd.f32 0.0, %v707
    %v709 = vpop.f32.mrb[0].mxu0
    %v710 = vpop.f32.mrb[0].mxu0
    %v711 = vpop.f32.mrb[0].mxu0
    %712 = vdwg.mxu0
    %v713 = vrcp.pop %v663
    %v714 = vmul.f32 %v708, %v713
    %v715 = vpack.c.bf16 %v714, %v714
    %716 = vrot.lane.b32.xlu0 %v606, 120
    %v717 = vpop.permute.xlu0 %716
    %718 = vrot.lane.b32.xlu0 %v606, 88
    %v719 = vpop.permute.xlu0 %718
    %v721 = vsel %vm141, %v717, 0
    %v724 = vsel %vm141, %v719, 0
    %726 = vmatprep.subr.bf16.mxu0 0
    %727 = vmatpush1.bf16.xpose.msra.mxu0 %v724
    %728 = vmatprep.subr.bf16.mxu0 0
    %729 = vmatpush1.bf16.xpose.msra.mxu0 0
    %730 = vmatprep.subr.bf16.mxu0 0
    %731 = vmatpush1.bf16.xpose.msra.mxu0 0
    %732 = vmatprep.subr.bf16.mxu0 0
    %733 = vmatpush1.bf16.xpose.msra.mxu0 0
    %734 = vmatprep.subr.bf16.mxu0 0
    %735 = vmatpush1.bf16.xpose.msra.mxu0 0
    %736 = vmatprep.subr.bf16.mxu0 0
    %737 = vmatpush1.bf16.xpose.msra.mxu0 0
    %738 = vmatprep.subr.bf16.mxu0 0
    %739 = vmatpush1.bf16.xpose.msra.mxu0 0
    %740 = vmatprep.subr.bf16.mxu0 0
    %741 = vmatpush1.bf16.xpose.msra.mxu0 0
    %742 = vmatprep.subr.bf16.mxu0 0
    %743 = vmatpush1.bf16.xpose.msra.mxu0 0
    %744 = vmatprep.subr.bf16.mxu0 0
    %745 = vmatpush1.bf16.xpose.msra.mxu0 0
    %746 = vmatprep.subr.bf16.mxu0 0
    %747 = vmatpush1.bf16.xpose.msra.mxu0 0
    %748 = vmatprep.subr.bf16.mxu0 0
    %749 = vmatpush1.bf16.xpose.msra.mxu0 0
    %750 = vmatprep.subr.bf16.mxu0 0
    %751 = vmatpush1.bf16.xpose.msra.mxu0 0
    %752 = vmatprep.subr.bf16.mxu0 0
    %753 = vmatpush1.bf16.xpose.msra.mxu0 0
    %754 = vmatprep.subr.bf16.mxu0 0
    %755 = vmatpush1.bf16.xpose.msra.mxu0 0
    %756 = vmatprep.subr.bf16.mxu0 0
    %757 = vmatpush1.bf16.xpose.msra.mxu0 0
    %758 = vmatprep.mubr.bf16.mxu0 0
    %759 = vmatmul.mubr.bf16.gmra.mrb[0].mxu0 %v721
    %v760 = vpop.f32.mrb[0].mxu0
    %v761 = vadd.f32 0.0, %v760
    %v762 = vpop.f32.mrb[0].mxu0
    %v763 = vpop.f32.mrb[0].mxu0
    %v764 = vpop.f32.mrb[0].mxu0
    %765 = vdwg.mxu0
    %v766 = vsel %vm141, %v761, -inf
    %767 = vmax.xlane.f32.xlu0 %v766
    %v768 = vpop.xlane.xlu0 %767
    %v769 = vsub.f32 %v761, %v768
    %v770 = vmul.f32 %v769, 1.442695
    %v771 = vpow.pop %v770
    %v772 = vsel %vm141, %v771, 0.0
    %773 = vadd.xlane.f32.xlu0 %v772
    %v774 = vpop.xlane.xlu0 %773
    %v775 = vpack.c.bf16 %v771, %v771
    %776 = vrot.lane.b32.xlu0 %v606, 56
    %v777 = vpop.permute.xlu0 %776
    %v779 = vsel %vm141, %v775, 0
    %v782 = vsel %vm203, %v777, 0
    %784 = vmatprep.subr.bf16.mxu0 0
    %785 = vmatpush1.bf16.msra.mxu0 %v782
    %786 = vmatprep.subr.bf16.mxu0 0
    %787 = vmatpush1.bf16.msra.mxu0 0
    %788 = vmatprep.subr.bf16.mxu0 0
    %789 = vmatpush1.bf16.msra.mxu0 0
    %790 = vmatprep.subr.bf16.mxu0 0
    %791 = vmatpush1.bf16.msra.mxu0 0
    %792 = vmatprep.subr.bf16.mxu0 0
    %793 = vmatpush1.bf16.msra.mxu0 0
    %794 = vmatprep.subr.bf16.mxu0 0
    %795 = vmatpush1.bf16.msra.mxu0 0
    %796 = vmatprep.subr.bf16.mxu0 0
    %797 = vmatpush1.bf16.msra.mxu0 0
    %798 = vmatprep.subr.bf16.mxu0 0
    %799 = vmatpush1.bf16.msra.mxu0 0
    %800 = vmatprep.subr.bf16.mxu0 0
    %801 = vmatpush1.bf16.msra.mxu0 0
    %802 = vmatprep.subr.bf16.mxu0 0
    %803 = vmatpush1.bf16.msra.mxu0 0
    %804 = vmatprep.subr.bf16.mxu0 0
    %805 = vmatpush1.bf16.msra.mxu0 0
    %806 = vmatprep.subr.bf16.mxu0 0
    %807 = vmatpush1.bf16.msra.mxu0 0
    %808 = vmatprep.subr.bf16.mxu0 0
    %809 = vmatpush1.bf16.msra.mxu0 0
    %810 = vmatprep.subr.bf16.mxu0 0
    %811 = vmatpush1.bf16.msra.mxu0 0
    %812 = vmatprep.subr.bf16.mxu0 0
    %813 = vmatpush1.bf16.msra.mxu0 0
    %814 = vmatprep.subr.bf16.mxu0 0
    %815 = vmatpush1.bf16.msra.mxu0 0
    %816 = vmatprep.mubr.bf16.mxu0 0
    %817 = vmatmul.mubr.bf16.gmra.mrb[0].mxu0 %v779
    %v818 = vpop.f32.mrb[0].mxu0
    %v819 = vadd.f32 0.0, %v818
    %v820 = vpop.f32.mrb[0].mxu0
    %v821 = vpop.f32.mrb[0].mxu0
    %v822 = vpop.f32.mrb[0].mxu0
    %823 = vdwg.mxu0
    %v824 = vrcp.pop %v774
    %v825 = vmul.f32 %v819, %v824
    %v826 = vpack.c.bf16 %v825, %v825
    %827 = vrot.lane.b32.xlu0 %v606, 112
    %v828 = vpop.permute.xlu0 %827
    %829 = vrot.lane.b32.xlu0 %v606, 80
    %v830 = vpop.permute.xlu0 %829
    %v832 = vsel %vm141, %v828, 0
    %v835 = vsel %vm141, %v830, 0
    %837 = vmatprep.subr.bf16.mxu0 0
    %838 = vmatpush1.bf16.xpose.msra.mxu0 %v835
    %839 = vmatprep.subr.bf16.mxu0 0
    %840 = vmatpush1.bf16.xpose.msra.mxu0 0
    %841 = vmatprep.subr.bf16.mxu0 0
    %842 = vmatpush1.bf16.xpose.msra.mxu0 0
    %843 = vmatprep.subr.bf16.mxu0 0
    %844 = vmatpush1.bf16.xpose.msra.mxu0 0
    %845 = vmatprep.subr.bf16.mxu0 0
    %846 = vmatpush1.bf16.xpose.msra.mxu0 0
    %847 = vmatprep.subr.bf16.mxu0 0
    %848 = vmatpush1.bf16.xpose.msra.mxu0 0
    %849 = vmatprep.subr.bf16.mxu0 0
    %850 = vmatpush1.bf16.xpose.msra.mxu0 0
    %851 = vmatprep.subr.bf16.mxu0 0
    %852 = vmatpush1.bf16.xpose.msra.mxu0 0
    %853 = vmatprep.subr.bf16.mxu0 0
    %854 = vmatpush1.bf16.xpose.msra.mxu0 0
    %855 = vmatprep.subr.bf16.mxu0 0
    %856 = vmatpush1.bf16.xpose.msra.mxu0 0
    %857 = vmatprep.subr.bf16.mxu0 0
    %858 = vmatpush1.bf16.xpose.msra.mxu0 0
    %859 = vmatprep.subr.bf16.mxu0 0
    %860 = vmatpush1.bf16.xpose.msra.mxu0 0
    %861 = vmatprep.subr.bf16.mxu0 0
    %862 = vmatpush1.bf16.xpose.msra.mxu0 0
    %863 = vmatprep.subr.bf16.mxu0 0
    %864 = vmatpush1.bf16.xpose.msra.mxu0 0
    %865 = vmatprep.subr.bf16.mxu0 0
    %866 = vmatpush1.bf16.xpose.msra.mxu0 0
    %867 = vmatprep.subr.bf16.mxu0 0
    %868 = vmatpush1.bf16.xpose.msra.mxu0 0
    %869 = vmatprep.mubr.bf16.mxu0 0
    %870 = vmatmul.mubr.bf16.gmra.mrb[0].mxu0 %v832
    %v871 = vpop.f32.mrb[0].mxu0
    %v872 = vadd.f32 0.0, %v871
    %v873 = vpop.f32.mrb[0].mxu0
    %v874 = vpop.f32.mrb[0].mxu0
    %v875 = vpop.f32.mrb[0].mxu0
    %876 = vdwg.mxu0
    %v877 = vsel %vm141, %v872, -inf
    %878 = vmax.xlane.f32.xlu0 %v877
    %v879 = vpop.xlane.xlu0 %878
    %v880 = vsub.f32 %v872, %v879
    %v881 = vmul.f32 %v880, 1.442695
    %v882 = vpow.pop %v881
    %v883 = vsel %vm141, %v882, 0.0
    %884 = vadd.xlane.f32.xlu0 %v883
    %v885 = vpop.xlane.xlu0 %884
    %v886 = vpack.c.bf16 %v882, %v882
    %887 = vrot.lane.b32.xlu0 %v606, 48
    %v888 = vpop.permute.xlu0 %887
    %v890 = vsel %vm141, %v886, 0
    %v893 = vsel %vm203, %v888, 0
    %895 = vmatprep.subr.bf16.mxu0 0
    %896 = vmatpush1.bf16.msra.mxu0 %v893
    %897 = vmatprep.subr.bf16.mxu0 0
    %898 = vmatpush1.bf16.msra.mxu0 0
    %899 = vmatprep.subr.bf16.mxu0 0
    %900 = vmatpush1.bf16.msra.mxu0 0
    %901 = vmatprep.subr.bf16.mxu0 0
    %902 = vmatpush1.bf16.msra.mxu0 0
    %903 = vmatprep.subr.bf16.mxu0 0
    %904 = vmatpush1.bf16.msra.mxu0 0
    %905 = vmatprep.subr.bf16.mxu0 0
    %906 = vmatpush1.bf16.msra.mxu0 0
    %907 = vmatprep.subr.bf16.mxu0 0
    %908 = vmatpush1.bf16.msra.mxu0 0
    %909 = vmatprep.subr.bf16.mxu0 0
    %910 = vmatpush1.bf16.msra.mxu0 0
    %911 = vmatprep.subr.bf16.mxu0 0
    %912 = vmatpush1.bf16.msra.mxu0 0
    %913 = vmatprep.subr.bf16.mxu0 0
    %914 = vmatpush1.bf16.msra.mxu0 0
    %915 = vmatprep.subr.bf16.mxu0 0
    %916 = vmatpush1.bf16.msra.mxu0 0
    %917 = vmatprep.subr.bf16.mxu0 0
    %918 = vmatpush1.bf16.msra.mxu0 0
    %919 = vmatprep.subr.bf16.mxu0 0
    %920 = vmatpush1.bf16.msra.mxu0 0
    %921 = vmatprep.subr.bf16.mxu0 0
    %922 = vmatpush1.bf16.msra.mxu0 0
    %923 = vmatprep.subr.bf16.mxu0 0
    %924 = vmatpush1.bf16.msra.mxu0 0
    %925 = vmatprep.subr.bf16.mxu0 0
    %926 = vmatpush1.bf16.msra.mxu0 0
    %927 = vmatprep.mubr.bf16.mxu0 0
    %928 = vmatmul.mubr.bf16.gmra.mrb[0].mxu0 %v890
    %v929 = vpop.f32.mrb[0].mxu0
    %v930 = vadd.f32 0.0, %v929
    %v931 = vpop.f32.mrb[0].mxu0
    %v932 = vpop.f32.mrb[0].mxu0
    %v933 = vpop.f32.mrb[0].mxu0
    %934 = vdwg.mxu0
    %v935 = vrcp.pop %v885
    %v936 = vmul.f32 %v930, %v935
    %v937 = vpack.c.bf16 %v936, %v936
    %938 = vrot.lane.b32.xlu0 %v606, 104
    %v939 = vpop.permute.xlu0 %938
    %940 = vrot.lane.b32.xlu0 %v606, 72
    %v941 = vpop.permute.xlu0 %940
    %v943 = vsel %vm141, %v939, 0
    %v946 = vsel %vm141, %v941, 0
    %948 = vmatprep.subr.bf16.mxu0 0
    %949 = vmatpush1.bf16.xpose.msra.mxu0 %v946
    %950 = vmatprep.subr.bf16.mxu0 0
    %951 = vmatpush1.bf16.xpose.msra.mxu0 0
    %952 = vmatprep.subr.bf16.mxu0 0
    %953 = vmatpush1.bf16.xpose.msra.mxu0 0
    %954 = vmatprep.subr.bf16.mxu0 0
    %955 = vmatpush1.bf16.xpose.msra.mxu0 0
    %956 = vmatprep.subr.bf16.mxu0 0
    %957 = vmatpush1.bf16.xpose.msra.mxu0 0
    %958 = vmatprep.subr.bf16.mxu0 0
    %959 = vmatpush1.bf16.xpose.msra.mxu0 0
    %960 = vmatprep.subr.bf16.mxu0 0
    %961 = vmatpush1.bf16.xpose.msra.mxu0 0
    %962 = vmatprep.subr.bf16.mxu0 0
    %963 = vmatpush1.bf16.xpose.msra.mxu0 0
    %964 = vmatprep.subr.bf16.mxu0 0
    %965 = vmatpush1.bf16.xpose.msra.mxu0 0
    %966 = vmatprep.subr.bf16.mxu0 0
    %967 = vmatpush1.bf16.xpose.msra.mxu0 0
    %968 = vmatprep.subr.bf16.mxu0 0
    %969 = vmatpush1.bf16.xpose.msra.mxu0 0
    %970 = vmatprep.subr.bf16.mxu0 0
    %971 = vmatpush1.bf16.xpose.msra.mxu0 0
    %972 = vmatprep.subr.bf16.mxu0 0
    %973 = vmatpush1.bf16.xpose.msra.mxu0 0
    %974 = vmatprep.subr.bf16.mxu0 0
    %975 = vmatpush1.bf16.xpose.msra.mxu0 0
    %976 = vmatprep.subr.bf16.mxu0 0
    %977 = vmatpush1.bf16.xpose.msra.mxu0 0
    %978 = vmatprep.subr.bf16.mxu0 0
    %979 = vmatpush1.bf16.xpose.msra.mxu0 0
    %980 = vmatprep.mubr.bf16.mxu0 0
    %981 = vmatmul.mubr.bf16.gmra.mrb[0].mxu0 %v943
    %v982 = vpop.f32.mrb[0].mxu0
    %v983 = vadd.f32 0.0, %v982
    %v984 = vpop.f32.mrb[0].mxu0
    %v985 = vpop.f32.mrb[0].mxu0
    %v986 = vpop.f32.mrb[0].mxu0
    %987 = vdwg.mxu0
    %v988 = vsel %vm141, %v983, -inf
    %989 = vmax.xlane.f32.xlu0 %v988
    %v990 = vpop.xlane.xlu0 %989
    %v991 = vsub.f32 %v983, %v990
    %v992 = vmul.f32 %v991, 1.442695
    %v993 = vpow.pop %v992
    %v994 = vsel %vm141, %v993, 0.0
    %995 = vadd.xlane.f32.xlu0 %v994
    %v996 = vpop.xlane.xlu0 %995
    %v997 = vpack.c.bf16 %v993, %v993
    %998 = vrot.lane.b32.xlu0 %v606, 40
    %v999 = vpop.permute.xlu0 %998
    %v1001 = vsel %vm141, %v997, 0
    %v1004 = vsel %vm203, %v999, 0
    %1006 = vmatprep.subr.bf16.mxu0 0
    %1007 = vmatpush1.bf16.msra.mxu0 %v1004
    %1008 = vmatprep.subr.bf16.mxu0 0
    %1009 = vmatpush1.bf16.msra.mxu0 0
    %1010 = vmatprep.subr.bf16.mxu0 0
    %1011 = vmatpush1.bf16.msra.mxu0 0
    %1012 = vmatprep.subr.bf16.mxu0 0
    %1013 = vmatpush1.bf16.msra.mxu0 0
    %1014 = vmatprep.subr.bf16.mxu0 0
    %1015 = vmatpush1.bf16.msra.mxu0 0
    %1016 = vmatprep.subr.bf16.mxu0 0
    %1017 = vmatpush1.bf16.msra.mxu0 0
    %1018 = vmatprep.subr.bf16.mxu0 0
    %1019 = vmatpush1.bf16.msra.mxu0 0
    %1020 = vmatprep.subr.bf16.mxu0 0
    %1021 = vmatpush1.bf16.msra.mxu0 0
    %1022 = vmatprep.subr.bf16.mxu0 0
    %1023 = vmatpush1.bf16.msra.mxu0 0
    %1024 = vmatprep.subr.bf16.mxu0 0
    %1025 = vmatpush1.bf16.msra.mxu0 0
    %1026 = vmatprep.subr.bf16.mxu0 0
    %1027 = vmatpush1.bf16.msra.mxu0 0
    %1028 = vmatprep.subr.bf16.mxu0 0
    %1029 = vmatpush1.bf16.msra.mxu0 0
    %1030 = vmatprep.subr.bf16.mxu0 0
    %1031 = vmatpush1.bf16.msra.mxu0 0
    %1032 = vmatprep.subr.bf16.mxu0 0
    %1033 = vmatpush1.bf16.msra.mxu0 0
    %1034 = vmatprep.subr.bf16.mxu0 0
    %1035 = vmatpush1.bf16.msra.mxu0 0
    %1036 = vmatprep.subr.bf16.mxu0 0
    %1037 = vmatpush1.bf16.msra.mxu0 0
    %1038 = vmatprep.mubr.bf16.mxu0 0
    %1039 = vmatmul.mubr.bf16.gmra.mrb[0].mxu0 %v1001
    %v1040 = vpop.f32.mrb[0].mxu0
    %v1041 = vadd.f32 0.0, %v1040
    %v1042 = vpop.f32.mrb[0].mxu0
    %v1043 = vpop.f32.mrb[0].mxu0
    %v1044 = vpop.f32.mrb[0].mxu0
    %1045 = vdwg.mxu0
    %v1046 = vrcp.pop %v996
    %v1047 = vmul.f32 %v1041, %v1046
    %v1048 = vpack.c.bf16 %v1047, %v1047
    %1050 = vrot.lane.b32.xlu0 %v826, 8
    %v1051 = vpop.permute.xlu0 %1050
    %1053 = vrot.lane.b32.xlu0 %v937, 16
    %v1054 = vpop.permute.xlu0 %1053
    %1056 = vrot.lane.b32.xlu0 %v1048, 24
    %v1057 = vpop.permute.xlu0 %1056
    %v1060 = vsel %vm141, %v715, %v1051
    %v1062 = vsel %vm595, %v1060, %v1054
    %v1064 = vsel %vm598, %v1062, %v1057
    %v1066 = vrot.slane %v1064, 4
    %vm1068 = vcmask 261124
    %1069 = vst.msk [vmem:[#allocation3] sm:$0xf0] %vm1068, %v1066
    %v1070 = vld [vmem:[#allocation3] sm:$0xff]
    %v1071 = vld [vmem:[#allocation9] sm:$0xf]
    %v1072 = vld [vmem:[#allocation9 + $0x4] sm:$0xf]
    %v1073 = vld [vmem:[#allocation9 + $0x8] sm:$0xf]
    %v1074 = vld [vmem:[#allocation9 + $0xc] sm:$0xf]
    %v1075 = vld [vmem:[%s4] sm:$0x1]
    %v1077 = vlaneseq
    %v1078 = vshrl.u32 %v1077, 7
    %v1079 = vsub.s32 0, %v1078
    %v1080 = vrot.slane %v1075, %v1079
    %v1086 = vunpack.c.l.b16 %v1071
    %v1087 = vunpack.c.l.b16 %v1072
    %v1088 = vunpack.c.l.b16 %v1073
    %v1089 = vunpack.c.l.b16 %v1074
    %v1090 = vpack.c.b16 %v1087, %v1086
    %v1091 = vpack.c.b16 %v1089, %v1088
    %v1095 = vsel %vm89, %v1070, 0
    %1097 = vmatprep.subr.bf16.mxu0 0
    %1098 = vmatpush1.bf16.msra.mxu0 %v1090
    %1099 = vmatprep.subr.bf16.mxu0 0
    %1100 = vmatpush1.bf16.msra.mxu0 %v1091
    %1101 = vmatprep.subr.bf16.mxu0 0
    %1102 = vmatpush1.bf16.msra.mxu0 0
    %1103 = vmatprep.subr.bf16.mxu0 0
    %1104 = vmatpush1.bf16.msra.mxu0 0
    %1105 = vmatprep.subr.bf16.mxu0 0
    %1106 = vmatpush1.bf16.msra.mxu0 0
    %1107 = vmatprep.subr.bf16.mxu0 0
    %1108 = vmatpush1.bf16.msra.mxu0 0
    %1109 = vmatprep.subr.bf16.mxu0 0
    %1110 = vmatpush1.bf16.msra.mxu0 0
    %1111 = vmatprep.subr.bf16.mxu0 0
    %1112 = vmatpush1.bf16.msra.mxu0 0
    %1113 = vmatprep.subr.bf16.mxu0 0
    %1114 = vmatpush1.bf16.msra.mxu0 0
    %1115 = vmatprep.subr.bf16.mxu0 0
    %1116 = vmatpush1.bf16.msra.mxu0 0
    %1117 = vmatprep.subr.bf16.mxu0 0
    %1118 = vmatpush1.bf16.msra.mxu0 0
    %1119 = vmatprep.subr.bf16.mxu0 0
    %1120 = vmatpush1.bf16.msra.mxu0 0
    %1121 = vmatprep.subr.bf16.mxu0 0
    %1122 = vmatpush1.bf16.msra.mxu0 0
    %1123 = vmatprep.subr.bf16.mxu0 0
    %1124 = vmatpush1.bf16.msra.mxu0 0
    %1125 = vmatprep.subr.bf16.mxu0 0
    %1126 = vmatpush1.bf16.msra.mxu0 0
    %1127 = vmatprep.subr.bf16.mxu0 0
    %1128 = vmatpush1.bf16.msra.mxu0 0
    %1129 = vmatprep.mubr.bf16.mxu0 0
    %1130 = vmatmul.mubr.bf16.gmra.mrb[0].mxu0 %v1095
    %v1131 = vpop.f32.mrb[0].mxu0
    %v1132 = vadd.f32 %v1080, %v1131
    %v1133 = vpop.f32.mrb[0].mxu0
    %v1134 = vpop.f32.mrb[0].mxu0
    %v1135 = vadd.f32 %v1080, %v1134
    %v1136 = vpop.f32.mrb[0].mxu0
    %1137 = vdwg.mxu0
    %1138 = vst.msk [vmem:[#allocation10] sm:$0xff] %vm89, %v1132
    %1139 = vst.msk [vmem:[#allocation10 + $0x8] sm:$0xff] %vm89, %v1135
    // Predicated region
    $region34: #{tpu_custom_call.1} parent=1 // pred_check
      _
    $region35: #{tpu_custom_call.1} parent=1 // pred_check_branch
      %1141 = sbr.rel (0) target = $region37
    $region36: #{tpu_custom_call.1} parent=1 // pred_region
      %s1143 = ssub.s32 256, 256
      %1144 = vsyncadd [#allocation6], %s1143
      %s1145 = sshll.u32 [#allocation10], 4
      %s1146 = int_to_ptr.vmem [resolvable:$true] %s1145
      %1151 = dma.vmem_to_hbm [thread:$0]  %s1146, 256, %s5, [#allocation6], 128, 128, 8
    $region37: #{tpu_custom_call.1} parent=1 // pred_fallthru
      _
    // Predicated region
    $region38: #{tpu_custom_call.1} parent=1 // pred_check
      _
    $region39: #{tpu_custom_call.1} parent=1 // pred_check_branch
      %1153 = sbr.rel (0) target = $region41
    $region40: #{tpu_custom_call.1} parent=1 // pred_region
      %1154 = dma.done [#allocation6], 256
    $region41: #{tpu_custom_call.1} parent=1 // pred_fallthru
      _
    %1155 = vsyncpa [#allocation5], 1
    %1156 = vsyncpa [#allocation8], 1
    %1157 = vsyncpa [#allocation6], 1

</llo_original>
